<compile_context>
chip_gen: v6e
topology: v6e:2x2x1
jax: 0.10.0
libtpu: 0.0.40
codegen_flags: <defaults>
</compile_context>

<pallas_src>
import functools

import jax
import jax.numpy as jnp
from jax.experimental import pallas as pl
from jax.experimental.pallas import tpu as pltpu


def _patch_merging_kernel(parts_ref, w1_ref, w2_ref, wrg_ref, bc_ref, out_ref,
                          *, fuse_k):
    bb, P, N, C = parts_ref.shape            # P == 5 frequency parts
    C2p = out_ref.shape[-1]
    inv5c = 1.0 / (P * C)

    parts = [parts_ref[:, p] for p in range(P)]          # 5 x (bb, N, C)

    # --- ChannelAttention(5C): avg/max pool over N + shared MLP (2 dots) ----
    pooled = jnp.concatenate(
        [jnp.concatenate([jnp.mean(p_, axis=1), jnp.max(p_, axis=1)], axis=0)
         for p_ in parts], axis=-1)                       # (2*bb, 5C)
    h = jnp.maximum(
        jnp.dot(pooled, w1_ref[...], preferred_element_type=jnp.float32), 0.0)
    h = h[:bb] + h[bb:]                                   # mlp(avg)+mlp(max) share W2
    gate = jax.nn.sigmoid(
        jnp.dot(h, w2_ref[...], preferred_element_type=jnp.float32))  # (bb, 5C)
    att = 1.0 + gate                                      # sigmoid(.)*x + x

    # --- gate + single-pass LayerNorm statistics over the 5C channels -------
    zs, s, sq = [], None, None
    for p in range(P):
        z = parts[p] * att[:, None, p * C:(p + 1) * C]
        zs.append(z)
        t = jnp.sum(z, axis=-1, keepdims=True)
        t2 = jnp.sum(z * z, axis=-1, keepdims=True)
        s = t if s is None else s + t
        sq = t2 if sq is None else sq + t2
    mu = s * inv5c                                        # (bb, N, 1)
    var = jnp.maximum(sq * inv5c - mu * mu, 0.0)
    inv = jax.lax.rsqrt(var + 1e-5)                       # (bb, N, 1)

    # --- reduction Linear(5C -> 2C, bias=False), gamma/beta/mean folded -----
    #   out = sum_p (z_p*inv) @ (gamma_p (.) wr_p) - (mu*inv)*colsum + beta@wr
    if fuse_k:
        op = jnp.concatenate([z * inv for z in zs], axis=-1)   # (bb, N, 5C)
        acc = jnp.dot(op.reshape(bb * N, P * C), wrg_ref[...],
                      preferred_element_type=jnp.float32)
    else:
        acc = None
        for p in range(P):
            contrib = jnp.dot((zs[p] * inv).reshape(bb * N, C), wrg_ref[p],
                              preferred_element_type=jnp.float32)
            acc = contrib if acc is None else acc + contrib
    acc = acc.reshape(bb, N, C2p)
    bc = bc_ref[...]                                      # (2, C2p)
    bias = bc[0:1, :][None]                               # beta @ wr
    colsum = bc[1:2, :][None]                             # column sums of gamma(.)wr
    out_ref[...] = (acc + (bias - (mu * inv) * colsum)).astype(out_ref.dtype)


def _vmem_caps():
    """(block+weight budget, scoped-vmem hard cap) -- generation aware."""
    phys = 128 * 1024 * 1024
    try:
        phys = int(getattr(pltpu.get_tpu_info(), "vmem_capacity_bytes", phys))
    except Exception:
        pass
    if phys <= 64 * 1024 * 1024:          # v7x-class: 64 MiB VMEM per TensorCore
        return 24 * 1024 * 1024, 32 * 1024 * 1024
    return 40 * 1024 * 1024, 48 * 1024 * 1024


def _pick_bb(batch, cap):
    """Largest divisor of `batch` <= cap, preferring an even number of grid
    steps so the 'parallel' axis splits evenly across 2 TensorCores (v7x)."""
    cap = max(1, min(batch, int(cap)))
    divs = [d for d in range(1, batch + 1) if batch % d == 0 and d <= cap]
    best = max(divs)
    even = [d for d in divs if (batch // d) % 2 == 0]
    if even and max(even) * 2 >= best:
        return max(even)
    return best


def patch_merging_forward(x, params, input_resolution, *, vmem_budget_bytes=None):
    """x: (B, H*W, C) float32 -> (B, (H/2)*(W/2), 2*C)."""
    H, W = input_resolution
    B, L, C = x.shape
    assert L == H * W, "input feature has wrong size"
    assert H % 2 == 0 and W % 2 == 0, "x size must be even"
    Hh, Wh = H // 2, W // 2
    N = Hh * Wh
    C2 = 2 * C
    C2p = C2 if C2 >= 128 else 128        # only pad output lanes below 128
    hi = jax.lax.Precision.HIGHEST

    xg = x.reshape(B, H, W, C)

    # 3x3 / stride-2 / pad-1 maxpool + Haar quadrant butterfly.  XLA fuses both
    # into the single write of the packed (B, 5, N, C) parts array, so each
    # kernel grid step's input block is one contiguous DMA.
    xp = jnp.pad(xg, ((0, 0), (1, 1), (1, 1), (0, 0)), constant_values=-jnp.inf)
    mp = None
    for di in range(3):
        for dj in range(3):
            view = xp[:, di:di + H:2, dj:dj + W:2, :]
            mp = view if mp is None else jnp.maximum(mp, view)
    q = xg.reshape(B, Hh, 2, Wh, 2, C)
    a, b = q[:, :, 0, :, 0, :], q[:, :, 0, :, 1, :]
    c, d = q[:, :, 1, :, 0, :], q[:, :, 1, :, 1, :]
    s0, d0, s1, d1 = a + b, a - b, c + d, c - d           # Haar butterfly (8 adds)
    parts = jnp.stack([mp,
                       (s0 + s1) * 0.5, (s0 - s1) * 0.5,
                       (d0 + d1) * 0.5, (d0 - d1) * 0.5],
                      axis=1).reshape(B, 5, N, C)

    # Fold LayerNorm affine into the reduction weight / a constant output bias.
    wr = params["wr"]                                      # (5C, 2C)
    wr_g = wr * params["gamma"][:, None]
    bias_out = jnp.dot(params["beta"], wr, precision=hi)   # (2C,)
    if C2p != C2:
        wr_g = jnp.pad(wr_g, ((0, 0), (0, C2p - C2)))
        bias_out = jnp.pad(bias_out, ((0, C2p - C2),))
    colsum = jnp.sum(wr_g, axis=0)                         # (C2p,)
    bc = jnp.stack([bias_out, colsum], axis=0)             # (2, C2p)
    fuse_k = (C % 128 == 0)                                # lane-aligned K fusion
    wrg = wr_g if fuse_k else wr_g.reshape(5, C, C2p)
    w1, w2 = params["w1"], params["w2"]

    # --- VMEM bookkeeping: double-buffered I/O blocks + 1x intermediates +
    #     weights * buffer_count; budget and hard cap are generation aware. ---
    budget, hard_cap = _vmem_caps()
    if vmem_budget_bytes is not None:
        budget = vmem_budget_bytes
    weight_bytes_raw = 4 * (w1.size + w2.size + wrg.size + bc.size)
    single_buffer_weights = weight_bytes_raw > (4 << 20)   # only when it matters
    weight_bytes = weight_bytes_raw * (1 if single_buffer_weights else 2)
    per_batch = 4 * N * ((5 * C + C2p) * 2      # double-buffered in/out blocks
                         + 12 * C + 2 * C2p)    # parts/zs/operand copies + acc
    avail = max(budget - weight_bytes, per_batch)
    bb = _pick_bb(B, min(32, avail // per_batch))
    needed = per_batch * bb + weight_bytes
    vmem_limit = int(max(min(needed + (8 << 20), hard_cap),
                         needed + (2 << 20), 16 << 20))

    def _const_spec(arr):
        nd = arr.ndim
        kw = {"pipeline_mode": pl.Buffered(1)} if single_buffer_weights else {}
        return pl.BlockSpec(arr.shape, lambda *_: (0,) * nd, **kw)

    grid = (B // bb,)
    out_full = pl.pallas_call(
        functools.partial(_patch_merging_kernel, fuse_k=fuse_k),
        out_shape=jax.ShapeDtypeStruct((B, N, C2p), x.dtype),
        grid_spec=pltpu.PrefetchScalarGridSpec(
            num_scalar_prefetch=0,
            grid=grid,
            in_specs=[
                pl.BlockSpec((bb, 5, N, C), lambda g: (g, 0, 0, 0)),
                _const_spec(w1),
                _const_spec(w2),
                _const_spec(wrg),
                _const_spec(bc),
            ],
            out_specs=pl.BlockSpec((bb, N, C2p), lambda g: (g, 0, 0)),
        ),
        compiler_params=pltpu.CompilerParams(
            dimension_semantics=("parallel",),
            vmem_limit_bytes=vmem_limit),
    )(parts, w1, w2, wrg, bc)

    return out_full[:, :, :C2] if C2p != C2 else out_full


def _reference_forward(x, params, input_resolution):
    """Plain-JAX reference with identical math (for sanity checking)."""
    H, W = input_resolution
    B, L, C = x.shape
    N = (H // 2) * (W // 2)
    xg = x.reshape(B, H, W, C)
    xp = jnp.pad(xg, ((0, 0), (1, 1), (1, 1), (0, 0)), constant_values=-jnp.inf)
    mp = jnp.stack([xp[:, di:di + H:2, dj:dj + W:2, :]
                    for di in range(3) for dj in range(3)], axis=0).max(axis=0)
    a = xg[:, 0::2, 0::2, :]; b = xg[:, 0::2, 1::2, :]
    c = xg[:, 1::2, 0::2, :]; d = xg[:, 1::2, 1::2, :]
    ll = (a + b + c + d) * 0.5
    lh = (a + b - c - d) * 0.5
    hl = (a - b + c - d) * 0.5
    hh = (a - b - c + d) * 0.5
    y = jnp.concatenate([mp, ll, lh, hl, hh], axis=-1).reshape(B, N, 5 * C)
    avg = jnp.mean(y, axis=1, keepdims=True)
    mx = jnp.max(y, axis=1, keepdims=True)
    hi = jax.lax.Precision.HIGHEST

    def mlp(v):
        h = jnp.maximum(jnp.dot(v, params["w1"], precision=hi), 0.0)
        return jnp.dot(h, params["w2"], precision=hi)

    gate = jax.nn.sigmoid(mlp(avg) + mlp(mx))
    z = y * (1.0 + gate)
    mu = jnp.mean(z, axis=-1, keepdims=True)
    var = jnp.mean((z - mu) ** 2, axis=-1, keepdims=True)
    zn = (z - mu) * jax.lax.rsqrt(var + 1e-5)
    zn = zn * params["gamma"] + params["beta"]
    return jnp.dot(zn, params["wr"], precision=hi)


if __name__ == "__main__":
    # Small shapes consistent with the module: B=2, H=W=8, dim=C=16.
    B, H, W, C = 2, 8, 8, 16
    hidden = (5 * C) // 16          # ChannelAttention ratio=16
    key = jax.random.PRNGKey(0)
    kx, k1, k2, kr, kg, kb = jax.random.split(key, 6)

    x = jax.random.normal(kx, (B, H * W, C), dtype=jnp.float32)
    params = {
        "w1": 0.02 * jax.random.normal(k1, (5 * C, hidden), dtype=jnp.float32),
        "w2": 0.02 * jax.random.normal(k2, (hidden, 5 * C), dtype=jnp.float32),
        "gamma": 1.0 + 0.1 * jax.random.normal(kg, (5 * C,), dtype=jnp.float32),
        "beta": 0.05 * jax.random.normal(kb, (5 * C,), dtype=jnp.float32),
        "wr": 0.02 * jax.random.normal(kr, (5 * C, 2 * C), dtype=jnp.float32),
    }

    fwd = jax.jit(functools.partial(patch_merging_forward,
                                    input_resolution=(H, W)))
    out = jax.block_until_ready(fwd(x, params))
    assert out.shape == (B, (H // 2) * (W // 2), 2 * C), out.shape
    assert bool(jnp.all(jnp.isfinite(out)))

    ref = _reference_forward(x, params, (H, W))
    assert bool(jnp.allclose(out, ref, rtol=2e-3, atol=2e-3)), \
        float(jnp.max(jnp.abs(out - ref)))

    print("KERNEL_OK")
</pallas_src>

<mosaic_0001>
module attributes {stable_mosaic.version = 11 : i64} {
  func.func @_patch_merging_kernel(%arg0: i32, %arg1: memref<1x5x16x16xf32, #tpu.memory_space<vmem>>, %arg2: memref<80x5xf32, #tpu.memory_space<vmem>>, %arg3: memref<5x80xf32, #tpu.memory_space<vmem>>, %arg4: memref<5x16x128xf32, #tpu.memory_space<vmem>>, %arg5: memref<2x128xf32, #tpu.memory_space<vmem>>, %arg6: memref<1x16x128xf32, #tpu.memory_space<vmem>>) attributes {dimension_semantics = [#tpu.dimension_semantics<parallel>], iteration_bounds = array<i64: 2>, scalar_prefetch = 0 : i64, scratch_operands = 0 : i64, tpu.core_type = #tpu.core_type<tc>, window_params = [{transform_indices = @transform_0, window_bounds = array<i64: 1, 5, 16, 16>}, {pipeline_mode = #tpu.pipeline_mode<synchronous>, transform_indices = @transform_1, window_bounds = array<i64: 80, 5>}, {pipeline_mode = #tpu.pipeline_mode<synchronous>, transform_indices = @transform_2, window_bounds = array<i64: 5, 80>}, {pipeline_mode = #tpu.pipeline_mode<synchronous>, transform_indices = @transform_3, window_bounds = array<i64: 5, 16, 128>}, {pipeline_mode = #tpu.pipeline_mode<synchronous>, transform_indices = @transform_4, window_bounds = array<i64: 2, 128>}, {transform_indices = @transform_5, window_bounds = array<i64: 1, 16, 128>}]} {
    %c0 = arith.constant 0 : index
    %c0_0 = arith.constant 0 : index
    %c0_1 = arith.constant 0 : index
    %c0_2 = arith.constant 0 : index
    %0 = vector.load %arg1[%c0, %c0_0, %c0_1, %c0_2] : memref<1x5x16x16xf32, #tpu.memory_space<vmem>>, vector<1x1x16x16xf32>
    %1 = vector.shape_cast %0 : vector<1x1x16x16xf32> to vector<1x16x16xf32>
    %c0_3 = arith.constant 0 : index
    %c1 = arith.constant 1 : index
    %c0_4 = arith.constant 0 : index
    %c0_5 = arith.constant 0 : index
    %2 = vector.load %arg1[%c0_3, %c1, %c0_4, %c0_5] : memref<1x5x16x16xf32, #tpu.memory_space<vmem>>, vector<1x1x16x16xf32>
    %3 = vector.shape_cast %2 : vector<1x1x16x16xf32> to vector<1x16x16xf32>
    %c0_6 = arith.constant 0 : index
    %c2 = arith.constant 2 : index
    %c0_7 = arith.constant 0 : index
    %c0_8 = arith.constant 0 : index
    %4 = vector.load %arg1[%c0_6, %c2, %c0_7, %c0_8] : memref<1x5x16x16xf32, #tpu.memory_space<vmem>>, vector<1x1x16x16xf32>
    %5 = vector.shape_cast %4 : vector<1x1x16x16xf32> to vector<1x16x16xf32>
    %c0_9 = arith.constant 0 : index
    %c3 = arith.constant 3 : index
    %c0_10 = arith.constant 0 : index
    %c0_11 = arith.constant 0 : index
    %6 = vector.load %arg1[%c0_9, %c3, %c0_10, %c0_11] : memref<1x5x16x16xf32, #tpu.memory_space<vmem>>, vector<1x1x16x16xf32>
    %7 = vector.shape_cast %6 : vector<1x1x16x16xf32> to vector<1x16x16xf32>
    %c0_12 = arith.constant 0 : index
    %c4 = arith.constant 4 : index
    %c0_13 = arith.constant 0 : index
    %c0_14 = arith.constant 0 : index
    %8 = vector.load %arg1[%c0_12, %c4, %c0_13, %c0_14] : memref<1x5x16x16xf32, #tpu.memory_space<vmem>>, vector<1x1x16x16xf32>
    %9 = vector.shape_cast %8 : vector<1x1x16x16xf32> to vector<1x16x16xf32>
    %cst = arith.constant dense<0.000000e+00> : vector<1x16xf32>
    %10 = vector.multi_reduction <add>, %1, %cst [1] : vector<1x16x16xf32> to vector<1x16xf32>
    %cst_15 = arith.constant 1.600000e+01 : f32
    %11 = vector.broadcast %cst_15 : f32 to vector<1x16xf32>
    %12 = arith.divf %10, %11 : vector<1x16xf32>
    %cst_16 = arith.constant dense<0xFF800000> : vector<1x16xf32>
    %13 = vector.multi_reduction <maximumf>, %1, %cst_16 [1] : vector<1x16x16xf32> to vector<1x16xf32>
    %14 = tpu.concatenate %12, %13 in 0 : vector<1x16xf32>, vector<1x16xf32> -> vector<2x16xf32>
    %cst_17 = arith.constant dense<0.000000e+00> : vector<1x16xf32>
    %15 = vector.multi_reduction <add>, %3, %cst_17 [1] : vector<1x16x16xf32> to vector<1x16xf32>
    %cst_18 = arith.constant 1.600000e+01 : f32
    %16 = vector.broadcast %cst_18 : f32 to vector<1x16xf32>
    %17 = arith.divf %15, %16 : vector<1x16xf32>
    %cst_19 = arith.constant dense<0xFF800000> : vector<1x16xf32>
    %18 = vector.multi_reduction <maximumf>, %3, %cst_19 [1] : vector<1x16x16xf32> to vector<1x16xf32>
    %19 = tpu.concatenate %17, %18 in 0 : vector<1x16xf32>, vector<1x16xf32> -> vector<2x16xf32>
    %cst_20 = arith.constant dense<0.000000e+00> : vector<1x16xf32>
    %20 = vector.multi_reduction <add>, %5, %cst_20 [1] : vector<1x16x16xf32> to vector<1x16xf32>
    %cst_21 = arith.constant 1.600000e+01 : f32
    %21 = vector.broadcast %cst_21 : f32 to vector<1x16xf32>
    %22 = arith.divf %20, %21 : vector<1x16xf32>
    %cst_22 = arith.constant dense<0xFF800000> : vector<1x16xf32>
    %23 = vector.multi_reduction <maximumf>, %5, %cst_22 [1] : vector<1x16x16xf32> to vector<1x16xf32>
    %24 = tpu.concatenate %22, %23 in 0 : vector<1x16xf32>, vector<1x16xf32> -> vector<2x16xf32>
    %cst_23 = arith.constant dense<0.000000e+00> : vector<1x16xf32>
    %25 = vector.multi_reduction <add>, %7, %cst_23 [1] : vector<1x16x16xf32> to vector<1x16xf32>
    %cst_24 = arith.constant 1.600000e+01 : f32
    %26 = vector.broadcast %cst_24 : f32 to vector<1x16xf32>
    %27 = arith.divf %25, %26 : vector<1x16xf32>
    %cst_25 = arith.constant dense<0xFF800000> : vector<1x16xf32>
    %28 = vector.multi_reduction <maximumf>, %7, %cst_25 [1] : vector<1x16x16xf32> to vector<1x16xf32>
    %29 = tpu.concatenate %27, %28 in 0 : vector<1x16xf32>, vector<1x16xf32> -> vector<2x16xf32>
    %cst_26 = arith.constant dense<0.000000e+00> : vector<1x16xf32>
    %30 = vector.multi_reduction <add>, %9, %cst_26 [1] : vector<1x16x16xf32> to vector<1x16xf32>
    %cst_27 = arith.constant 1.600000e+01 : f32
    %31 = vector.broadcast %cst_27 : f32 to vector<1x16xf32>
    %32 = arith.divf %30, %31 : vector<1x16xf32>
    %cst_28 = arith.constant dense<0xFF800000> : vector<1x16xf32>
    %33 = vector.multi_reduction <maximumf>, %9, %cst_28 [1] : vector<1x16x16xf32> to vector<1x16xf32>
    %34 = tpu.concatenate %32, %33 in 0 : vector<1x16xf32>, vector<1x16xf32> -> vector<2x16xf32>
    %35 = tpu.concatenate %14, %19, %24, %29, %34 in 1 : vector<2x16xf32>, vector<2x16xf32>, vector<2x16xf32>, vector<2x16xf32>, vector<2x16xf32> -> vector<2x80xf32>
    %c0_29 = arith.constant 0 : index
    %c0_30 = arith.constant 0 : index
    %36 = vector.load %arg2[%c0_29, %c0_30] : memref<80x5xf32, #tpu.memory_space<vmem>>, vector<80x5xf32>
    %cst_31 = arith.constant dense<0.000000e+00> : vector<2x5xf32>
    %37 = tpu.matmul %35, %36, %cst_31 {dimension_numbers = #tpu.dot_dimension_numbers<[1], [0], [0], [1], [0, 0, 1, 1], [], []>} : vector<2x80xf32>, vector<80x5xf32>, vector<2x5xf32> -> vector<2x5xf32>
    %cst_32 = arith.constant 0.000000e+00 : f32
    %38 = vector.broadcast %cst_32 : f32 to vector<2x5xf32>
    %39 = arith.maximumf %37, %38 : vector<2x5xf32>
    %40 = vector.extract_strided_slice %39 {offsets = [0, 0], sizes = [1, 5], strides = [1, 1]} : vector<2x5xf32> to vector<1x5xf32>
    %41 = vector.extract_strided_slice %39 {offsets = [1, 0], sizes = [1, 5], strides = [1, 1]} : vector<2x5xf32> to vector<1x5xf32>
    %42 = arith.addf %40, %41 : vector<1x5xf32>
    %c0_33 = arith.constant 0 : index
    %c0_34 = arith.constant 0 : index
    %43 = vector.load %arg3[%c0_33, %c0_34] : memref<5x80xf32, #tpu.memory_space<vmem>>, vector<5x80xf32>
    %cst_35 = arith.constant dense<0.000000e+00> : vector<1x80xf32>
    %44 = tpu.matmul %42, %43, %cst_35 {dimension_numbers = #tpu.dot_dimension_numbers<[1], [0], [0], [1], [0, 0, 1, 1], [], []>} : vector<1x5xf32>, vector<5x80xf32>, vector<1x80xf32> -> vector<1x80xf32>
    %45 = arith.negf %44 : vector<1x80xf32>
    %46 = math.exp %45 : vector<1x80xf32>
    %cst_36 = arith.constant 1.000000e+00 : f32
    %47 = vector.broadcast %cst_36 : f32 to vector<1x80xf32>
    %48 = arith.addf %47, %46 : vector<1x80xf32>
    %49 = arith.divf %47, %48 : vector<1x80xf32>
    %cst_37 = arith.constant 1.000000e+00 : f32
    %50 = vector.broadcast %cst_37 : f32 to vector<1x80xf32>
    %51 = arith.addf %50, %49 : vector<1x80xf32>
    %52 = vector.extract_strided_slice %51 {offsets = [0, 0], sizes = [1, 16], strides = [1, 1]} : vector<1x80xf32> to vector<1x16xf32>
    %53 = vector.shape_cast %52 : vector<1x16xf32> to vector<1x1x16xf32>
    %54 = vector.broadcast %53 : vector<1x1x16xf32> to vector<1x16x16xf32>
    %55 = arith.mulf %1, %54 : vector<1x16x16xf32>
    %cst_38 = arith.constant dense<0.000000e+00> : vector<1x16xf32>
    %56 = vector.multi_reduction <add>, %55, %cst_38 [2] : vector<1x16x16xf32> to vector<1x16xf32>
    %57 = vector.shape_cast %56 : vector<1x16xf32> to vector<1x16x1xf32>
    %58 = arith.mulf %55, %55 : vector<1x16x16xf32>
    %cst_39 = arith.constant dense<0.000000e+00> : vector<1x16xf32>
    %59 = vector.multi_reduction <add>, %58, %cst_39 [2] : vector<1x16x16xf32> to vector<1x16xf32>
    %60 = vector.shape_cast %59 : vector<1x16xf32> to vector<1x16x1xf32>
    %61 = vector.extract_strided_slice %51 {offsets = [0, 16], sizes = [1, 16], strides = [1, 1]} : vector<1x80xf32> to vector<1x16xf32>
    %62 = vector.shape_cast %61 : vector<1x16xf32> to vector<1x1x16xf32>
    %63 = vector.broadcast %62 : vector<1x1x16xf32> to vector<1x16x16xf32>
    %64 = arith.mulf %3, %63 : vector<1x16x16xf32>
    %cst_40 = arith.constant dense<0.000000e+00> : vector<1x16xf32>
    %65 = vector.multi_reduction <add>, %64, %cst_40 [2] : vector<1x16x16xf32> to vector<1x16xf32>
    %66 = vector.shape_cast %65 : vector<1x16xf32> to vector<1x16x1xf32>
    %67 = arith.mulf %64, %64 : vector<1x16x16xf32>
    %cst_41 = arith.constant dense<0.000000e+00> : vector<1x16xf32>
    %68 = vector.multi_reduction <add>, %67, %cst_41 [2] : vector<1x16x16xf32> to vector<1x16xf32>
    %69 = vector.shape_cast %68 : vector<1x16xf32> to vector<1x16x1xf32>
    %70 = arith.addf %57, %66 : vector<1x16x1xf32>
    %71 = arith.addf %60, %69 : vector<1x16x1xf32>
    %72 = vector.extract_strided_slice %51 {offsets = [0, 32], sizes = [1, 16], strides = [1, 1]} : vector<1x80xf32> to vector<1x16xf32>
    %73 = vector.shape_cast %72 : vector<1x16xf32> to vector<1x1x16xf32>
    %74 = vector.broadcast %73 : vector<1x1x16xf32> to vector<1x16x16xf32>
    %75 = arith.mulf %5, %74 : vector<1x16x16xf32>
    %cst_42 = arith.constant dense<0.000000e+00> : vector<1x16xf32>
    %76 = vector.multi_reduction <add>, %75, %cst_42 [2] : vector<1x16x16xf32> to vector<1x16xf32>
    %77 = vector.shape_cast %76 : vector<1x16xf32> to vector<1x16x1xf32>
    %78 = arith.mulf %75, %75 : vector<1x16x16xf32>
    %cst_43 = arith.constant dense<0.000000e+00> : vector<1x16xf32>
    %79 = vector.multi_reduction <add>, %78, %cst_43 [2] : vector<1x16x16xf32> to vector<1x16xf32>
    %80 = vector.shape_cast %79 : vector<1x16xf32> to vector<1x16x1xf32>
    %81 = arith.addf %70, %77 : vector<1x16x1xf32>
    %82 = arith.addf %71, %80 : vector<1x16x1xf32>
    %83 = vector.extract_strided_slice %51 {offsets = [0, 48], sizes = [1, 16], strides = [1, 1]} : vector<1x80xf32> to vector<1x16xf32>
    %84 = vector.shape_cast %83 : vector<1x16xf32> to vector<1x1x16xf32>
    %85 = vector.broadcast %84 : vector<1x1x16xf32> to vector<1x16x16xf32>
    %86 = arith.mulf %7, %85 : vector<1x16x16xf32>
    %cst_44 = arith.constant dense<0.000000e+00> : vector<1x16xf32>
    %87 = vector.multi_reduction <add>, %86, %cst_44 [2] : vector<1x16x16xf32> to vector<1x16xf32>
    %88 = vector.shape_cast %87 : vector<1x16xf32> to vector<1x16x1xf32>
    %89 = arith.mulf %86, %86 : vector<1x16x16xf32>
    %cst_45 = arith.constant dense<0.000000e+00> : vector<1x16xf32>
    %90 = vector.multi_reduction <add>, %89, %cst_45 [2] : vector<1x16x16xf32> to vector<1x16xf32>
    %91 = vector.shape_cast %90 : vector<1x16xf32> to vector<1x16x1xf32>
    %92 = arith.addf %81, %88 : vector<1x16x1xf32>
    %93 = arith.addf %82, %91 : vector<1x16x1xf32>
    %94 = vector.extract_strided_slice %51 {offsets = [0, 64], sizes = [1, 16], strides = [1, 1]} : vector<1x80xf32> to vector<1x16xf32>
    %95 = vector.shape_cast %94 : vector<1x16xf32> to vector<1x1x16xf32>
    %96 = vector.broadcast %95 : vector<1x1x16xf32> to vector<1x16x16xf32>
    %97 = arith.mulf %9, %96 : vector<1x16x16xf32>
    %cst_46 = arith.constant dense<0.000000e+00> : vector<1x16xf32>
    %98 = vector.multi_reduction <add>, %97, %cst_46 [2] : vector<1x16x16xf32> to vector<1x16xf32>
    %99 = vector.shape_cast %98 : vector<1x16xf32> to vector<1x16x1xf32>
    %100 = arith.mulf %97, %97 : vector<1x16x16xf32>
    %cst_47 = arith.constant dense<0.000000e+00> : vector<1x16xf32>
    %101 = vector.multi_reduction <add>, %100, %cst_47 [2] : vector<1x16x16xf32> to vector<1x16xf32>
    %102 = vector.shape_cast %101 : vector<1x16xf32> to vector<1x16x1xf32>
    %103 = arith.addf %92, %99 : vector<1x16x1xf32>
    %104 = arith.addf %93, %102 : vector<1x16x1xf32>
    %cst_48 = arith.constant 1.250000e-02 : f32
    %105 = vector.broadcast %cst_48 : f32 to vector<1x16x1xf32>
    %106 = arith.mulf %103, %105 : vector<1x16x1xf32>
    %cst_49 = arith.constant 1.250000e-02 : f32
    %107 = vector.broadcast %cst_49 : f32 to vector<1x16x1xf32>
    %108 = arith.mulf %104, %107 : vector<1x16x1xf32>
    %109 = arith.mulf %106, %106 : vector<1x16x1xf32>
    %110 = arith.subf %108, %109 : vector<1x16x1xf32>
    %cst_50 = arith.constant 0.000000e+00 : f32
    %111 = vector.broadcast %cst_50 : f32 to vector<1x16x1xf32>
    %112 = arith.maximumf %110, %111 : vector<1x16x1xf32>
    %cst_51 = arith.constant 9.99999974E-6 : f32
    %113 = vector.broadcast %cst_51 : f32 to vector<1x16x1xf32>
    %114 = arith.addf %112, %113 : vector<1x16x1xf32>
    %115 = math.rsqrt %114 : vector<1x16x1xf32>
    %116 = vector.broadcast %115 : vector<1x16x1xf32> to vector<1x16x16xf32>
    %117 = arith.mulf %55, %116 : vector<1x16x16xf32>
    %118 = vector.shape_cast %117 : vector<1x16x16xf32> to vector<16x16xf32>
    %c0_52 = arith.constant 0 : index
    %c0_53 = arith.constant 0 : index
    %c0_54 = arith.constant 0 : index
    %119 = vector.load %arg4[%c0_52, %c0_53, %c0_54] : memref<5x16x128xf32, #tpu.memory_space<vmem>>, vector<1x16x128xf32>
    %120 = vector.shape_cast %119 : vector<1x16x128xf32> to vector<16x128xf32>
    %cst_55 = arith.constant dense<0.000000e+00> : vector<16x128xf32>
    %121 = tpu.matmul %118, %120, %cst_55 {dimension_numbers = #tpu.dot_dimension_numbers<[1], [0], [0], [1], [0, 0, 1, 1], [], []>} : vector<16x16xf32>, vector<16x128xf32>, vector<16x128xf32> -> vector<16x128xf32>
    %122 = vector.broadcast %115 : vector<1x16x1xf32> to vector<1x16x16xf32>
    %123 = arith.mulf %64, %122 : vector<1x16x16xf32>
    %124 = vector.shape_cast %123 : vector<1x16x16xf32> to vector<16x16xf32>
    %c1_56 = arith.constant 1 : index
    %c0_57 = arith.constant 0 : index
    %c0_58 = arith.constant 0 : index
    %125 = vector.load %arg4[%c1_56, %c0_57, %c0_58] : memref<5x16x128xf32, #tpu.memory_space<vmem>>, vector<1x16x128xf32>
    %126 = vector.shape_cast %125 : vector<1x16x128xf32> to vector<16x128xf32>
    %cst_59 = arith.constant dense<0.000000e+00> : vector<16x128xf32>
    %127 = tpu.matmul %124, %126, %cst_59 {dimension_numbers = #tpu.dot_dimension_numbers<[1], [0], [0], [1], [0, 0, 1, 1], [], []>} : vector<16x16xf32>, vector<16x128xf32>, vector<16x128xf32> -> vector<16x128xf32>
    %128 = arith.addf %121, %127 : vector<16x128xf32>
    %129 = vector.broadcast %115 : vector<1x16x1xf32> to vector<1x16x16xf32>
    %130 = arith.mulf %75, %129 : vector<1x16x16xf32>
    %131 = vector.shape_cast %130 : vector<1x16x16xf32> to vector<16x16xf32>
    %c2_60 = arith.constant 2 : index
    %c0_61 = arith.constant 0 : index
    %c0_62 = arith.constant 0 : index
    %132 = vector.load %arg4[%c2_60, %c0_61, %c0_62] : memref<5x16x128xf32, #tpu.memory_space<vmem>>, vector<1x16x128xf32>
    %133 = vector.shape_cast %132 : vector<1x16x128xf32> to vector<16x128xf32>
    %cst_63 = arith.constant dense<0.000000e+00> : vector<16x128xf32>
    %134 = tpu.matmul %131, %133, %cst_63 {dimension_numbers = #tpu.dot_dimension_numbers<[1], [0], [0], [1], [0, 0, 1, 1], [], []>} : vector<16x16xf32>, vector<16x128xf32>, vector<16x128xf32> -> vector<16x128xf32>
    %135 = arith.addf %128, %134 : vector<16x128xf32>
    %136 = vector.broadcast %115 : vector<1x16x1xf32> to vector<1x16x16xf32>
    %137 = arith.mulf %86, %136 : vector<1x16x16xf32>
    %138 = vector.shape_cast %137 : vector<1x16x16xf32> to vector<16x16xf32>
    %c3_64 = arith.constant 3 : index
    %c0_65 = arith.constant 0 : index
    %c0_66 = arith.constant 0 : index
    %139 = vector.load %arg4[%c3_64, %c0_65, %c0_66] : memref<5x16x128xf32, #tpu.memory_space<vmem>>, vector<1x16x128xf32>
    %140 = vector.shape_cast %139 : vector<1x16x128xf32> to vector<16x128xf32>
    %cst_67 = arith.constant dense<0.000000e+00> : vector<16x128xf32>
    %141 = tpu.matmul %138, %140, %cst_67 {dimension_numbers = #tpu.dot_dimension_numbers<[1], [0], [0], [1], [0, 0, 1, 1], [], []>} : vector<16x16xf32>, vector<16x128xf32>, vector<16x128xf32> -> vector<16x128xf32>
    %142 = arith.addf %135, %141 : vector<16x128xf32>
    %143 = vector.broadcast %115 : vector<1x16x1xf32> to vector<1x16x16xf32>
    %144 = arith.mulf %97, %143 : vector<1x16x16xf32>
    %145 = vector.shape_cast %144 : vector<1x16x16xf32> to vector<16x16xf32>
    %c4_68 = arith.constant 4 : index
    %c0_69 = arith.constant 0 : index
    %c0_70 = arith.constant 0 : index
    %146 = vector.load %arg4[%c4_68, %c0_69, %c0_70] : memref<5x16x128xf32, #tpu.memory_space<vmem>>, vector<1x16x128xf32>
    %147 = vector.shape_cast %146 : vector<1x16x128xf32> to vector<16x128xf32>
    %cst_71 = arith.constant dense<0.000000e+00> : vector<16x128xf32>
    %148 = tpu.matmul %145, %147, %cst_71 {dimension_numbers = #tpu.dot_dimension_numbers<[1], [0], [0], [1], [0, 0, 1, 1], [], []>} : vector<16x16xf32>, vector<16x128xf32>, vector<16x128xf32> -> vector<16x128xf32>
    %149 = arith.addf %142, %148 : vector<16x128xf32>
    %150 = vector.shape_cast %149 : vector<16x128xf32> to vector<1x16x128xf32>
    %c0_72 = arith.constant 0 : index
    %c0_73 = arith.constant 0 : index
    %151 = vector.load %arg5[%c0_72, %c0_73] : memref<2x128xf32, #tpu.memory_space<vmem>>, vector<2x128xf32>
    %152 = vector.extract_strided_slice %151 {offsets = [0, 0], sizes = [1, 128], strides = [1, 1]} : vector<2x128xf32> to vector<1x128xf32>
    %153 = vector.shape_cast %152 : vector<1x128xf32> to vector<1x1x128xf32>
    %154 = vector.extract_strided_slice %151 {offsets = [1, 0], sizes = [1, 128], strides = [1, 1]} : vector<2x128xf32> to vector<1x128xf32>
    %155 = vector.shape_cast %154 : vector<1x128xf32> to vector<1x1x128xf32>
    %156 = arith.mulf %106, %115 : vector<1x16x1xf32>
    %157 = vector.broadcast %156 : vector<1x16x1xf32> to vector<1x16x128xf32>
    %158 = vector.broadcast %155 : vector<1x1x128xf32> to vector<1x16x128xf32>
    %159 = arith.mulf %157, %158 : vector<1x16x128xf32>
    %160 = vector.broadcast %153 : vector<1x1x128xf32> to vector<1x16x128xf32>
    %161 = arith.subf %160, %159 : vector<1x16x128xf32>
    %162 = arith.addf %150, %161 : vector<1x16x128xf32>
    %c0_74 = arith.constant 0 : index
    %c0_75 = arith.constant 0 : index
    %c0_76 = arith.constant 0 : index
    %163 = vector.load %arg6[%c0_74, %c0_75, %c0_76] : memref<1x16x128xf32, #tpu.memory_space<vmem>>, vector<1x16x128xf32>
    tpu.vector_store %arg6[%c0_74, %c0_75, %c0_76], %162 {strides = array<i32>} : memref<1x16x128xf32, #tpu.memory_space<vmem>>, vector<1x16x128xf32>,
    return
  }
  func.func @transform_0(%arg0: i32) -> (i32, i32, i32, i32) {
    %c0_i32 = arith.constant 0 : i32
    %c0_i32_0 = arith.constant 0 : i32
    %c0_i32_1 = arith.constant 0 : i32
    %c0_i32_2 = arith.constant 0 : i32
    return %arg0, %c0_i32, %c0_i32_0, %c0_i32_1 : i32, i32, i32, i32
  }
  func.func @transform_1(%arg0: i32) -> (i32, i32) {
    %c0_i32 = arith.constant 0 : i32
    %c0_i32_0 = arith.constant 0 : i32
    %c0_i32_1 = arith.constant 0 : i32
    return %c0_i32, %c0_i32_0 : i32, i32
  }
  func.func @transform_2(%arg0: i32) -> (i32, i32) {
    %c0_i32 = arith.constant 0 : i32
    %c0_i32_0 = arith.constant 0 : i32
    %c0_i32_1 = arith.constant 0 : i32
    return %c0_i32, %c0_i32_0 : i32, i32
  }
  func.func @transform_3(%arg0: i32) -> (i32, i32, i32) {
    %c0_i32 = arith.constant 0 : i32
    %c0_i32_0 = arith.constant 0 : i32
    %c0_i32_1 = arith.constant 0 : i32
    %c0_i32_2 = arith.constant 0 : i32
    return %c0_i32, %c0_i32_0, %c0_i32_1 : i32, i32, i32
  }
  func.func @transform_4(%arg0: i32) -> (i32, i32) {
    %c0_i32 = arith.constant 0 : i32
    %c0_i32_0 = arith.constant 0 : i32
    %c0_i32_1 = arith.constant 0 : i32
    return %c0_i32, %c0_i32_0 : i32, i32
  }
  func.func @transform_5(%arg0: i32) -> (i32, i32, i32) {
    %c0_i32 = arith.constant 0 : i32
    %c0_i32_0 = arith.constant 0 : i32
    %c0_i32_1 = arith.constant 0 : i32
    return %arg0, %c0_i32, %c0_i32_0 : i32, i32, i32
  }
}

</mosaic_0001>

<llo_original>
// kernel: patch_merging_forward.1
$region0: #{patch_merging_forward.1}
  #allocation0 [shape = 'u32[]', space=smem, size = 0x4, offset = 0x4, fixed_abs, tag = 'smem constant byte address 0x4 - core index']
  #allocation1 [shape = 'u32[144,128]{1,0:T(1,128)}', space=vmem, size = 0x12000, scoped, tag = 'internal scratch']
  %s0 = inlined_call_operand.vmem [shape: f32[2,5,16,16], index: 0, kind: input, shape index: {}]
  %s1 = inlined_call_operand.vmem [shape: f32[80,5], index: 1, kind: input, shape index: {}]
  %s2 = inlined_call_operand.vmem [shape: f32[5,80], index: 2, kind: input, shape index: {}]
  %s3 = inlined_call_operand.vmem [shape: f32[5,16,128], index: 3, kind: input, shape index: {}]
  %s4 = inlined_call_operand.vmem [shape: f32[2,128], index: 4, kind: input, shape index: {}]
  %s5 = inlined_call_operand.hbm [shape: f32[2,16,128], index: 5, kind: output, shape index: {}]
  %s6 = sld [smem:[#allocation0]]
  $region53: #{patch_merging_forward.1} parent=0
    _
  %s8 = ssub.s32 1, %s6
  %s9 = scalar_select 0, %s8, %s6
  $region1: #{patch_merging_forward.1} parent=0
    #allocation2 [shape = 'u8[16384]{0}', space=vmem, size = 0x4000, scoped, tag = 'output window, operand 0']
    #allocation3 [shape = 's32[2]{0}', space=sflag, size = 0x8, scoped, tag = 'scoped memory for patch_merging_forward.1']
    %10 = vsyncpa [#allocation3], 0
    %s11 = scalar_lea.sflag [#allocation3], 1
    %12 = vsyncpa %s11, 0
    loop: start=0, step=1, limit=4
    $region2: #{patch_merging_forward.1} parent=1 // loop_pre_header
      _
    $region3: #{patch_merging_forward.1} parent=1 // loop_header
      %s14 = sphi 0, %s18
      %p15 = scmp.ge.s32.totalorder %s14, 4
      %s24 = sphi 0, %s26
      %s27 = sphi 0, %s24
      %s28 = sphi 0, %s27
      %s44 = sphi 0, %s28
      %s48 = sphi 0, %s48
      %s50 = sphi 0, %s48
      %s51 = sphi 0, %s50
      %s65 = sphi 0, %s51
      %s69 = sphi 0, %s69
      %s71 = sphi 0, %s69
      %s72 = sphi 0, %s71
      %s86 = sphi 0, %s72
      %s90 = sphi 0, %s90
      %s92 = sphi 0, %s90
      %s93 = sphi 0, %s92
      %s107 = sphi 0, %s93
      %s111 = sphi 0, %s111
      %s113 = sphi 0, %s111
      %s114 = sphi 0, %s113
      %s128 = sphi 0, %s114
      %s134 = sphi 0, %s136
      %s137 = sphi 0, %s134
      %s138 = sphi 0, %s137
      %s154 = sphi 0, %s138
    $region4: #{patch_merging_forward.1} parent=1 // loop_header_branch
      %17 = sbr.rel (%p15) target = $region8
    $region5: #{patch_merging_forward.1} parent=1 // loop_body
      %s19 = ssub.s32 %s14, 1
      %s20 = ssub.s32 %s14, 2
      %s21 = sadd.s32 %s14, 1
      %s22 = ssub.s32 %s14, %s21
      %p23 = scmp.eq.s32.totalorder %s22, 0
      %s25 = sadd.s32 %s24, 1
      %s26 = scalar_select %p23, %s24, %s25
      %p29 = pneg %p23
      %p30 = scmp.eq.s32.totalorder %s14, 1
      %p31 = por %p29, %p30
      %p32 = scmp.ne.s32.totalorder %s24, %s27
      %p33 = scmp.eq.s32.totalorder %s14, 0
      %p34 = por %p32, %p33
      %p35 = scmp.ne.s32.totalorder %s24, %s27
      %p36 = scmp.eq.s32.totalorder %s19, 1
      %p37 = por %p35, %p36
      %p38 = scmp.ne.s32.totalorder %s27, %s28
      %p39 = scmp.eq.s32.totalorder %s19, 0
      %p40 = por %p38, %p39
      %p41 = scmp.ne.s32.totalorder %s27, %s28
      %p42 = scmp.eq.s32.totalorder %s20, 1
      %p43 = por %p41, %p42
      %p45 = scmp.ne.s32.totalorder %s28, %s44
      %p46 = scmp.eq.s32.totalorder %s20, 0
      %p47 = por %p45, %p46
      %s49 = sadd.s32 %s48, 1
      %p52 = scmp.eq.s32.totalorder %s14, 1
      %p53 = scmp.ne.s32.totalorder %s48, %s50
      %p54 = scmp.eq.s32.totalorder %s14, 0
      %p55 = por %p53, %p54
      %p56 = scmp.ne.s32.totalorder %s48, %s50
      %p57 = scmp.eq.s32.totalorder %s19, 1
      %p58 = por %p56, %p57
      %p59 = scmp.ne.s32.totalorder %s50, %s51
      %p60 = scmp.eq.s32.totalorder %s19, 0
      %p61 = por %p59, %p60
      %p62 = scmp.ne.s32.totalorder %s50, %s51
      %p63 = scmp.eq.s32.totalorder %s20, 1
      %p64 = por %p62, %p63
      %p66 = scmp.ne.s32.totalorder %s51, %s65
      %p67 = scmp.eq.s32.totalorder %s20, 0
      %p68 = por %p66, %p67
      %s70 = sadd.s32 %s69, 1
      %p73 = scmp.eq.s32.totalorder %s14, 1
      %p74 = scmp.ne.s32.totalorder %s69, %s71
      %p75 = scmp.eq.s32.totalorder %s14, 0
      %p76 = por %p74, %p75
      %p77 = scmp.ne.s32.totalorder %s69, %s71
      %p78 = scmp.eq.s32.totalorder %s19, 1
      %p79 = por %p77, %p78
      %p80 = scmp.ne.s32.totalorder %s71, %s72
      %p81 = scmp.eq.s32.totalorder %s19, 0
      %p82 = por %p80, %p81
      %p83 = scmp.ne.s32.totalorder %s71, %s72
      %p84 = scmp.eq.s32.totalorder %s20, 1
      %p85 = por %p83, %p84
      %p87 = scmp.ne.s32.totalorder %s72, %s86
      %p88 = scmp.eq.s32.totalorder %s20, 0
      %p89 = por %p87, %p88
      %s91 = sadd.s32 %s90, 1
      %p94 = scmp.eq.s32.totalorder %s14, 1
      %p95 = scmp.ne.s32.totalorder %s90, %s92
      %p96 = scmp.eq.s32.totalorder %s14, 0
      %p97 = por %p95, %p96
      %p98 = scmp.ne.s32.totalorder %s90, %s92
      %p99 = scmp.eq.s32.totalorder %s19, 1
      %p100 = por %p98, %p99
      %p101 = scmp.ne.s32.totalorder %s92, %s93
      %p102 = scmp.eq.s32.totalorder %s19, 0
      %p103 = por %p101, %p102
      %p104 = scmp.ne.s32.totalorder %s92, %s93
      %p105 = scmp.eq.s32.totalorder %s20, 1
      %p106 = por %p104, %p105
      %p108 = scmp.ne.s32.totalorder %s93, %s107
      %p109 = scmp.eq.s32.totalorder %s20, 0
      %p110 = por %p108, %p109
      %s112 = sadd.s32 %s111, 1
      %p115 = scmp.eq.s32.totalorder %s14, 1
      %p116 = scmp.ne.s32.totalorder %s111, %s113
      %p117 = scmp.eq.s32.totalorder %s14, 0
      %p118 = por %p116, %p117
      %p119 = scmp.ne.s32.totalorder %s111, %s113
      %p120 = scmp.eq.s32.totalorder %s19, 1
      %p121 = por %p119, %p120
      %p122 = scmp.ne.s32.totalorder %s113, %s114
      %p123 = scmp.eq.s32.totalorder %s19, 0
      %p124 = por %p122, %p123
      %p125 = scmp.ne.s32.totalorder %s113, %s114
      %p126 = scmp.eq.s32.totalorder %s20, 1
      %p127 = por %p125, %p126
      %p129 = scmp.ne.s32.totalorder %s114, %s128
      %p130 = scmp.eq.s32.totalorder %s20, 0
      %p131 = por %p129, %p130
      %s132 = ssub.s32 %s14, %s21
      %p133 = scmp.eq.s32.totalorder %s132, 0
      %s135 = sadd.s32 %s134, 1
      %s136 = scalar_select %p133, %s134, %s135
      %p139 = pneg %p133
      %p140 = scmp.eq.s32.totalorder %s14, 1
      %p141 = por %p139, %p140
      %p142 = scmp.ne.s32.totalorder %s134, %s137
      %p143 = scmp.eq.s32.totalorder %s14, 0
      %p144 = por %p142, %p143
      %p145 = scmp.ne.s32.totalorder %s134, %s137
      %p146 = scmp.eq.s32.totalorder %s19, 1
      %p147 = por %p145, %p146
      %p148 = scmp.ne.s32.totalorder %s137, %s138
      %p149 = scmp.eq.s32.totalorder %s19, 0
      %p150 = por %p148, %p149
      %p151 = scmp.ne.s32.totalorder %s137, %s138
      %p152 = scmp.eq.s32.totalorder %s20, 1
      %p153 = por %p151, %p152
      %p155 = scmp.ne.s32.totalorder %s138, %s154
      %p156 = scmp.eq.s32.totalorder %s20, 0
      %p157 = por %p155, %p156
      %p158 = scmp.le.s32.totalorder 1, %s14
      %p159 = scmp.lt.s32.totalorder %s14, 3
      %p160 = pnand %p158, %p159
      %p161 = pneg %p160
      // Predicated region
      $region9: #{patch_merging_forward.1} parent=5 // pred_check
        _
      $region10: #{patch_merging_forward.1} parent=5 // pred_check_branch
        %163 = sbr.rel (%p160) target = $region12
      $region11: #{patch_merging_forward.1} parent=5 // pred_region
        %s164 = ssub.s32 %s14, 1
        // Predicated region
        $region13: #{patch_merging_forward.1} parent=11 // pred_check
          %p165 = pneg %p61
        $region14: #{patch_merging_forward.1} parent=11 // pred_check_branch
          %167 = sbr.rel (%p165) target = $region16
        $region15: #{patch_merging_forward.1} parent=11 // pred_region
          _
        $region16: #{patch_merging_forward.1} parent=11 // pred_fallthru
          _
        // Predicated region
        $region17: #{patch_merging_forward.1} parent=11 // pred_check
          %p168 = pneg %p82
        $region18: #{patch_merging_forward.1} parent=11 // pred_check_branch
          %170 = sbr.rel (%p168) target = $region20
        $region19: #{patch_merging_forward.1} parent=11 // pred_region
          _
        $region20: #{patch_merging_forward.1} parent=11 // pred_fallthru
          _
        // Predicated region
        $region21: #{patch_merging_forward.1} parent=11 // pred_check
          %p171 = pneg %p103
        $region22: #{patch_merging_forward.1} parent=11 // pred_check_branch
          %173 = sbr.rel (%p171) target = $region24
        $region23: #{patch_merging_forward.1} parent=11 // pred_region
          _
        $region24: #{patch_merging_forward.1} parent=11 // pred_fallthru
          _
        // Predicated region
        $region25: #{patch_merging_forward.1} parent=11 // pred_check
          %p174 = pneg %p124
        $region26: #{patch_merging_forward.1} parent=11 // pred_check_branch
          %176 = sbr.rel (%p174) target = $region28
        $region27: #{patch_merging_forward.1} parent=11 // pred_region
          _
        $region28: #{patch_merging_forward.1} parent=11 // pred_fallthru
          _
      $region12: #{patch_merging_forward.1} parent=5 // pred_fallthru
        _
      %p177 = scmp.lt.s32.totalorder %s14, 2
      // Predicated region
      $region29: #{patch_merging_forward.1} parent=5 // pred_check
        %p178 = pneg %p177
      $region30: #{patch_merging_forward.1} parent=5 // pred_check_branch
        %180 = sbr.rel (%p178) target = $region32
      $region31: #{patch_merging_forward.1} parent=5 // pred_region
        // Predicated region
        $region33: #{patch_merging_forward.1} parent=31 // pred_check
          %p181 = pneg %p34
        $region34: #{patch_merging_forward.1} parent=31 // pred_check_branch
          %183 = sbr.rel (%p181) target = $region36
        $region35: #{patch_merging_forward.1} parent=31 // pred_region
          %p184 = scmp.lt.s32.totalorder %s14, 1
          %s185 = scalar_select %p184, %s14, 1
          %s186 = smul.addr %s185, 10
          %s187 = smul.addr %s186, 8
          %s188 = scalar_lea.vmem %s0, %s187
        $region36: #{patch_merging_forward.1} parent=31 // pred_fallthru
          _
      $region32: #{patch_merging_forward.1} parent=5 // pred_fallthru
        _
      %p189 = scmp.le.s32.totalorder 1, %s14
      %p190 = scmp.lt.s32.totalorder %s14, 3
      %p191 = pnand %p189, %p190
      %p192 = pneg %p191
      // Predicated region
      $region37: #{patch_merging_forward.1} parent=5 // pred_check
        _
      $region38: #{patch_merging_forward.1} parent=5 // pred_check_branch
        %194 = sbr.rel (%p191) target = $region40
      $region39: #{patch_merging_forward.1} parent=5 // pred_region
        %s195 = ssub.s32 %s14, 1
        %p196 = scmp.lt.s32.totalorder %s19, 1
        %s197 = scalar_select %p196, %s19, 1
        %s198 = smul.addr %s197, 10
        %s199 = smul.addr %s198, 8
        %s200 = scalar_lea.vmem %s0, %s199
        %p201 = pneg %p40
        %p202 = pneg %p37
        %p203 = pneg %p61
        %p204 = pneg %p58
        %p205 = pneg %p82
        %p206 = pneg %p79
        %p207 = pneg %p103
        %p208 = pneg %p100
        %p209 = pneg %p124
        %p210 = pneg %p121
        %p211 = pneg %p150
        %p212 = pneg %p147
        %s213 = sand.u32 %s137, 1
        %s214 = scalar_lea.sflag [#allocation3], %s213
        %s215 = sand.u32 %s137, 1
        %s216 = smul.addr %s215, 16
        %s217 = scalar_lea.vmem [#allocation2], %s216
        %p218 = scmp.lt.s32.totalorder %s19, 1
        %s219 = scalar_select %p218, %s19, 1
        %s220 = smul.addr %s219, 10
        %s221 = smul.addr %s220, 8
        %s222 = scalar_lea.vmem %s0, %s221
        %v223 = vld [vmem:[%s222] sm:$0xff]
        %v224 = vld [vmem:[%s222 + $0x8] sm:$0xff]
        %s225 = scalar_lea.vmem %s222, 16
        %v226 = vld [vmem:[%s225] sm:$0xff]
        %v227 = vld [vmem:[%s225 + $0x8] sm:$0xff]
        %s228 = scalar_lea.vmem %s222, 32
        %v229 = vld [vmem:[%s228] sm:$0xff]
        %v230 = vld [vmem:[%s228 + $0x8] sm:$0xff]
        %s231 = scalar_lea.vmem %s222, 48
        %v232 = vld [vmem:[%s231] sm:$0xff]
        %v233 = vld [vmem:[%s231 + $0x8] sm:$0xff]
        %s234 = scalar_lea.vmem %s222, 64
        %v235 = vld [vmem:[%s234] sm:$0xff]
        %v236 = vld [vmem:[%s234 + $0x8] sm:$0xff]
        %vm237 = vcmask 130048
        %v238 = vsel %vm237, %v223, 0.0
        %v239 = vsel %vm237, %v224, 0.0
        %v240 = vadd.f32 %v238, %v239
        %v241 = vrot.slane %v240, 4
        %v242 = vadd.f32 %v240, %v241
        %v243 = vrot.slane %v242, 2
        %v244 = vadd.f32 %v242, %v243
        %v245 = vrot.slane %v244, 1
        %v246 = vadd.f32 %v244, %v245
        %v247 = vrcp.pop 16.0
        %v248 = vmul.f32 %v246, %v247
        %v249 = vsel %vm237, %v223, -inf
        %v250 = vsel %vm237, %v224, -inf
        %v251 = vmax.f32 %v249, %v250
        %v252 = vrot.slane %v251, 4
        %v253 = vmax.f32 %v251, %v252
        %v254 = vrot.slane %v253, 2
        %v255 = vmax.f32 %v253, %v254
        %v256 = vrot.slane %v255, 1
        %v257 = vmax.f32 %v255, %v256
        %vm258 = vcmask 1040384
        %v259 = vsel %vm258, %v248, %v257
        %v260 = vsel %vm237, %v226, 0.0
        %v261 = vsel %vm237, %v227, 0.0
        %v262 = vadd.f32 %v260, %v261
        %v263 = vrot.slane %v262, 4
        %v264 = vadd.f32 %v262, %v263
        %v265 = vrot.slane %v264, 2
        %v266 = vadd.f32 %v264, %v265
        %v267 = vrot.slane %v266, 1
        %v268 = vadd.f32 %v266, %v267
        %v269 = vmul.f32 %v268, %v247
        %v270 = vsel %vm237, %v226, -inf
        %v271 = vsel %vm237, %v227, -inf
        %v272 = vmax.f32 %v270, %v271
        %v273 = vrot.slane %v272, 4
        %v274 = vmax.f32 %v272, %v273
        %v275 = vrot.slane %v274, 2
        %v276 = vmax.f32 %v274, %v275
        %v277 = vrot.slane %v276, 1
        %v278 = vmax.f32 %v276, %v277
        %v279 = vsel %vm258, %v269, %v278
        %v280 = vsel %vm237, %v229, 0.0
        %v281 = vsel %vm237, %v230, 0.0
        %v282 = vadd.f32 %v280, %v281
        %v283 = vrot.slane %v282, 4
        %v284 = vadd.f32 %v282, %v283
        %v285 = vrot.slane %v284, 2
        %v286 = vadd.f32 %v284, %v285
        %v287 = vrot.slane %v286, 1
        %v288 = vadd.f32 %v286, %v287
        %v289 = vmul.f32 %v288, %v247
        %v290 = vsel %vm237, %v229, -inf
        %v291 = vsel %vm237, %v230, -inf
        %v292 = vmax.f32 %v290, %v291
        %v293 = vrot.slane %v292, 4
        %v294 = vmax.f32 %v292, %v293
        %v295 = vrot.slane %v294, 2
        %v296 = vmax.f32 %v294, %v295
        %v297 = vrot.slane %v296, 1
        %v298 = vmax.f32 %v296, %v297
        %v299 = vsel %vm258, %v289, %v298
        %v300 = vsel %vm237, %v232, 0.0
        %v301 = vsel %vm237, %v233, 0.0
        %v302 = vadd.f32 %v300, %v301
        %v303 = vrot.slane %v302, 4
        %v304 = vadd.f32 %v302, %v303
        %v305 = vrot.slane %v304, 2
        %v306 = vadd.f32 %v304, %v305
        %v307 = vrot.slane %v306, 1
        %v308 = vadd.f32 %v306, %v307
        %v309 = vmul.f32 %v308, %v247
        %v310 = vsel %vm237, %v232, -inf
        %v311 = vsel %vm237, %v233, -inf
        %v312 = vmax.f32 %v310, %v311
        %v313 = vrot.slane %v312, 4
        %v314 = vmax.f32 %v312, %v313
        %v315 = vrot.slane %v314, 2
        %v316 = vmax.f32 %v314, %v315
        %v317 = vrot.slane %v316, 1
        %v318 = vmax.f32 %v316, %v317
        %v319 = vsel %vm258, %v309, %v318
        %v320 = vsel %vm237, %v235, 0.0
        %v321 = vsel %vm237, %v236, 0.0
        %v322 = vadd.f32 %v320, %v321
        %v323 = vrot.slane %v322, 4
        %v324 = vadd.f32 %v322, %v323
        %v325 = vrot.slane %v324, 2
        %v326 = vadd.f32 %v324, %v325
        %v327 = vrot.slane %v326, 1
        %v328 = vadd.f32 %v326, %v327
        %v329 = vmul.f32 %v328, %v247
        %v330 = vsel %vm237, %v235, -inf
        %v331 = vsel %vm237, %v236, -inf
        %v332 = vmax.f32 %v330, %v331
        %v333 = vrot.slane %v332, 4
        %v334 = vmax.f32 %v332, %v333
        %v335 = vrot.slane %v334, 2
        %v336 = vmax.f32 %v334, %v335
        %v337 = vrot.slane %v336, 1
        %v338 = vmax.f32 %v336, %v337
        %v339 = vsel %vm258, %v329, %v338
        %341 = vrot.lane.b32.xlu0 %v279, 16
        %v342 = vpop.permute.xlu0 %341
        %345 = vrot.lane.b32.xlu0 %v299, 32
        %v346 = vpop.permute.xlu0 %345
        %349 = vrot.lane.b32.xlu0 %v319, 48
        %v350 = vpop.permute.xlu0 %349
        %353 = vrot.lane.b32.xlu0 %v339, 64
        %v354 = vpop.permute.xlu0 %353
        %v356 = vsel %vm237, %v259, %v342
        %vm357 = vcmask 261120
        %v358 = vsel %vm357, %v356, %v346
        %vm359 = vcmask 392192
        %v360 = vsel %vm359, %v358, %v350
        %vm361 = vcmask 523264
        %v362 = vsel %vm361, %v360, %v354
        %v363 = vld [vmem:[%s1] sm:$0xff]
        %v364 = vld [vmem:[%s1 + $0x8] sm:$0xff]
        %v365 = vld [vmem:[%s1 + $0x10] sm:$0xff]
        %v366 = vld [vmem:[%s1 + $0x18] sm:$0xff]
        %v367 = vld [vmem:[%s1 + $0x20] sm:$0xff]
        %v368 = vld [vmem:[%s1 + $0x28] sm:$0xff]
        %v369 = vld [vmem:[%s1 + $0x30] sm:$0xff]
        %v370 = vld [vmem:[%s1 + $0x38] sm:$0xff]
        %v371 = vld [vmem:[%s1 + $0x40] sm:$0xff]
        %v372 = vld [vmem:[%s1 + $0x48] sm:$0xff]
        %vm373 = vcmask 654336
        %v375 = vsel %vm373, %v362, 0
        %377 = vmatprep.subr.mxu0 0.0
        %378 = vmatpush1.msra.mxu0 0.0
        %379 = vmatprep.subr.mxu0 0.0
        %380 = vmatpush1.msra.mxu0 0.0
        %381 = vmatprep.subr.mxu0 0.0
        %382 = vmatpush1.msra.mxu0 0.0
        %383 = vmatprep.subr.mxu0 0.0
        %384 = vmatpush1.msra.mxu0 0.0
        %385 = vmatprep.subr.mxu0 0.0
        %386 = vmatpush1.msra.mxu0 0.0
        %387 = vmatprep.subr.mxu0 0.0
        %388 = vmatpush1.msra.mxu0 0.0
        %389 = vmatprep.subr.mxu0 0.0
        %390 = vmatpush1.msra.mxu0 %v372
        %391 = vmatprep.subr.mxu0 0.0
        %392 = vmatpush1.msra.mxu0 %v371
        %393 = vmatprep.subr.mxu0 0.0
        %394 = vmatpush1.msra.mxu0 %v370
        %395 = vmatprep.subr.mxu0 0.0
        %396 = vmatpush1.msra.mxu0 %v369
        %397 = vmatprep.subr.mxu0 0.0
        %398 = vmatpush1.msra.mxu0 %v368
        %399 = vmatprep.subr.mxu0 0.0
        %400 = vmatpush1.msra.mxu0 %v367
        %401 = vmatprep.subr.mxu0 0.0
        %402 = vmatpush1.msra.mxu0 %v366
        %403 = vmatprep.subr.mxu0 0.0
        %404 = vmatpush1.msra.mxu0 %v365
        %405 = vmatprep.subr.mxu0 0.0
        %406 = vmatpush1.msra.mxu0 %v364
        %407 = vmatprep.subr.mxu0 0.0
        %408 = vmatpush1.msra.mxu0 %v363
        %409 = vmatprep.subr.mxu0 0.0
        %410 = vmatpush2.msra.mxu0 0.0
        %411 = vmatprep.subr.mxu0 0.0
        %412 = vmatpush2.msra.mxu0 0.0
        %413 = vmatprep.subr.mxu0 0.0
        %414 = vmatpush2.msra.mxu0 0.0
        %415 = vmatprep.subr.mxu0 0.0
        %416 = vmatpush2.msra.mxu0 0.0
        %417 = vmatprep.subr.mxu0 0.0
        %418 = vmatpush2.msra.mxu0 0.0
        %419 = vmatprep.subr.mxu0 0.0
        %420 = vmatpush2.msra.mxu0 0.0
        %421 = vmatprep.subr.mxu0 0.0
        %422 = vmatpush2.msra.mxu0 0.0
        %423 = vmatprep.subr.mxu0 0.0
        %424 = vmatpush2.msra.mxu0 0.0
        %425 = vmatprep.subr.mxu0 0.0
        %426 = vmatpush2.msra.mxu0 0.0
        %427 = vmatprep.subr.mxu0 0.0
        %428 = vmatpush2.msra.mxu0 0.0
        %429 = vmatprep.subr.mxu0 0.0
        %430 = vmatpush2.msra.mxu0 0.0
        %431 = vmatprep.subr.mxu0 0.0
        %432 = vmatpush2.msra.mxu0 0.0
        %433 = vmatprep.subr.mxu0 0.0
        %434 = vmatpush2.msra.mxu0 0.0
        %435 = vmatprep.subr.mxu0 0.0
        %436 = vmatpush2.msra.mxu0 0.0
        %437 = vmatprep.subr.mxu0 0.0
        %438 = vmatpush2.msra.mxu0 0.0
        %439 = vmatprep.subr.mxu0 0.0
        %440 = vmatpush2.msra.mxu0 0.0
        %441 = vmatprep.mubr.f32.mxu0 0.0
        %442 = vmatmul.mubr.f32.gmra.mxu0 %v375
        %v443 = vpop.f32.mrf.mxu0
        %v444 = vadd.f32 0.0, %v443
        %v445 = vpop.f32.mrf.mxu0
        %446 = vdwg.mxu0
        %v447 = vmax.f32 %v444, 0.0
        %v449 = vrot.slane %v447, 1
        %v451 = vadd.f32 %v447, %v449
        %v452 = vld [vmem:[%s2] sm:$0x1f]
        %vm453 = vcmask 39936
        %v455 = vsel %vm453, %v451, 0
        %vm457 = vcmask 1044480
        %v459 = vsel %vm457, %v452, 0
        %461 = vmatprep.subr.mxu0 0.0
        %462 = vmatpush1.msra.mxu0 0.0
        %463 = vmatprep.subr.mxu0 0.0
        %464 = vmatpush1.msra.mxu0 0.0
        %465 = vmatprep.subr.mxu0 0.0
        %466 = vmatpush1.msra.mxu0 0.0
        %467 = vmatprep.subr.mxu0 0.0
        %468 = vmatpush1.msra.mxu0 0.0
        %469 = vmatprep.subr.mxu0 0.0
        %470 = vmatpush1.msra.mxu0 0.0
        %471 = vmatprep.subr.mxu0 0.0
        %472 = vmatpush1.msra.mxu0 0.0
        %473 = vmatprep.subr.mxu0 0.0
        %474 = vmatpush1.msra.mxu0 0.0
        %475 = vmatprep.subr.mxu0 0.0
        %476 = vmatpush1.msra.mxu0 0.0
        %477 = vmatprep.subr.mxu0 0.0
        %478 = vmatpush1.msra.mxu0 0.0
        %479 = vmatprep.subr.mxu0 0.0
        %480 = vmatpush1.msra.mxu0 0.0
        %481 = vmatprep.subr.mxu0 0.0
        %482 = vmatpush1.msra.mxu0 0.0
        %483 = vmatprep.subr.mxu0 0.0
        %484 = vmatpush1.msra.mxu0 0.0
        %485 = vmatprep.subr.mxu0 0.0
        %486 = vmatpush1.msra.mxu0 0.0
        %487 = vmatprep.subr.mxu0 0.0
        %488 = vmatpush1.msra.mxu0 0.0
        %489 = vmatprep.subr.mxu0 0.0
        %490 = vmatpush1.msra.mxu0 0.0
        %491 = vmatprep.subr.mxu0 0.0
        %492 = vmatpush1.msra.mxu0 %v459
        %493 = vmatprep.subr.mxu0 0.0
        %494 = vmatpush2.msra.mxu0 0.0
        %495 = vmatprep.subr.mxu0 0.0
        %496 = vmatpush2.msra.mxu0 0.0
        %497 = vmatprep.subr.mxu0 0.0
        %498 = vmatpush2.msra.mxu0 0.0
        %499 = vmatprep.subr.mxu0 0.0
        %500 = vmatpush2.msra.mxu0 0.0
        %501 = vmatprep.subr.mxu0 0.0
        %502 = vmatpush2.msra.mxu0 0.0
        %503 = vmatprep.subr.mxu0 0.0
        %504 = vmatpush2.msra.mxu0 0.0
        %505 = vmatprep.subr.mxu0 0.0
        %506 = vmatpush2.msra.mxu0 0.0
        %507 = vmatprep.subr.mxu0 0.0
        %508 = vmatpush2.msra.mxu0 0.0
        %509 = vmatprep.subr.mxu0 0.0
        %510 = vmatpush2.msra.mxu0 0.0
        %511 = vmatprep.subr.mxu0 0.0
        %512 = vmatpush2.msra.mxu0 0.0
        %513 = vmatprep.subr.mxu0 0.0
        %514 = vmatpush2.msra.mxu0 0.0
        %515 = vmatprep.subr.mxu0 0.0
        %516 = vmatpush2.msra.mxu0 0.0
        %517 = vmatprep.subr.mxu0 0.0
        %518 = vmatpush2.msra.mxu0 0.0
        %519 = vmatprep.subr.mxu0 0.0
        %520 = vmatpush2.msra.mxu0 0.0
        %521 = vmatprep.subr.mxu0 0.0
        %522 = vmatpush2.msra.mxu0 0.0
        %523 = vmatprep.subr.mxu0 0.0
        %524 = vmatpush2.msra.mxu0 0.0
        %525 = vmatprep.mubr.f32.mxu0 0.0
        %526 = vmatmul.mubr.f32.gmra.mxu0 %v455
        %v527 = vpop.f32.mrf.mxu0
        %v528 = vadd.f32 0.0, %v527
        %v529 = vpop.f32.mrf.mxu0
        %530 = vdwg.mxu0
        %v531 = vxor.u32 %v528, 2147483648
        %v532 = vmul.f32 %v531, 1.442695
        %v533 = vpow.pop %v532
        %v534 = vadd.f32 %v533, 1.0
        %v535 = vrcp.pop %v534
        %v536 = vmul.f32 1.0, %v535
        %v537 = vadd.f32 %v536, 1.0
        %v538 = vlaneseq
        %v539 = vshrl.u32 %v538, 7
        %v540 = vsub.s32 0, %v539
        %v541 = vrot.slane %v537, %v540
        %v542 = vmul.f32 %v223, %v541
        %v543 = vmul.f32 %v224, %v541
        %v544 = vsel %vm237, %v542, 0.0
        %545 = vadd.xlane.f32.xlu0 %v544
        %v546 = vpop.xlane.xlu0 %545
        %v547 = vsel %vm237, %v543, 0.0
        %548 = vadd.xlane.f32.xlu0 %v547
        %v549 = vpop.xlane.xlu0 %548
        %v550 = vmul.f32 %v542, %v542
        %v551 = vmul.f32 %v543, %v543
        %v552 = vsel %vm237, %v550, 0.0
        %553 = vadd.xlane.f32.xlu0 %v552
        %v554 = vpop.xlane.xlu0 %553
        %v555 = vsel %vm237, %v551, 0.0
        %556 = vadd.xlane.f32.xlu0 %v555
        %v557 = vpop.xlane.xlu0 %556
        %559 = vrot.lane.b32.xlu0 %v541, 112
        %v560 = vpop.permute.xlu0 %559
        %v562 = vmul.f32 %v226, %v560
        %v563 = vmul.f32 %v227, %v560
        %v564 = vsel %vm237, %v562, 0.0
        %565 = vadd.xlane.f32.xlu0 %v564
        %v566 = vpop.xlane.xlu0 %565
        %v567 = vsel %vm237, %v563, 0.0
        %568 = vadd.xlane.f32.xlu0 %v567
        %v569 = vpop.xlane.xlu0 %568
        %v570 = vmul.f32 %v562, %v562
        %v571 = vmul.f32 %v563, %v563
        %v572 = vsel %vm237, %v570, 0.0
        %573 = vadd.xlane.f32.xlu0 %v572
        %v574 = vpop.xlane.xlu0 %573
        %v575 = vsel %vm237, %v571, 0.0
        %576 = vadd.xlane.f32.xlu0 %v575
        %v577 = vpop.xlane.xlu0 %576
        %v578 = vadd.f32 %v546, %v566
        %v579 = vadd.f32 %v549, %v569
        %v580 = vadd.f32 %v554, %v574
        %v581 = vadd.f32 %v557, %v577
        %582 = vrot.lane.b32.xlu0 %v541, 96
        %v583 = vpop.permute.xlu0 %582
        %v585 = vmul.f32 %v229, %v583
        %v586 = vmul.f32 %v230, %v583
        %v587 = vsel %vm237, %v585, 0.0
        %588 = vadd.xlane.f32.xlu0 %v587
        %v589 = vpop.xlane.xlu0 %588
        %v590 = vsel %vm237, %v586, 0.0
        %591 = vadd.xlane.f32.xlu0 %v590
        %v592 = vpop.xlane.xlu0 %591
        %v593 = vmul.f32 %v585, %v585
        %v594 = vmul.f32 %v586, %v586
        %v595 = vsel %vm237, %v593, 0.0
        %596 = vadd.xlane.f32.xlu0 %v595
        %v597 = vpop.xlane.xlu0 %596
        %v598 = vsel %vm237, %v594, 0.0
        %599 = vadd.xlane.f32.xlu0 %v598
        %v600 = vpop.xlane.xlu0 %599
        %v601 = vadd.f32 %v578, %v589
        %v602 = vadd.f32 %v579, %v592
        %v603 = vadd.f32 %v580, %v597
        %v604 = vadd.f32 %v581, %v600
        %605 = vrot.lane.b32.xlu0 %v541, 80
        %v606 = vpop.permute.xlu0 %605
        %v608 = vmul.f32 %v232, %v606
        %v609 = vmul.f32 %v233, %v606
        %v610 = vsel %vm237, %v608, 0.0
        %611 = vadd.xlane.f32.xlu0 %v610
        %v612 = vpop.xlane.xlu0 %611
        %v613 = vsel %vm237, %v609, 0.0
        %614 = vadd.xlane.f32.xlu0 %v613
        %v615 = vpop.xlane.xlu0 %614
        %v616 = vmul.f32 %v608, %v608
        %v617 = vmul.f32 %v609, %v609
        %v618 = vsel %vm237, %v616, 0.0
        %619 = vadd.xlane.f32.xlu0 %v618
        %v620 = vpop.xlane.xlu0 %619
        %v621 = vsel %vm237, %v617, 0.0
        %622 = vadd.xlane.f32.xlu0 %v621
        %v623 = vpop.xlane.xlu0 %622
        %v624 = vadd.f32 %v601, %v612
        %v625 = vadd.f32 %v602, %v615
        %v626 = vadd.f32 %v603, %v620
        %v627 = vadd.f32 %v604, %v623
        %628 = vrot.lane.b32.xlu0 %v541, 64
        %v629 = vpop.permute.xlu0 %628
        %v631 = vmul.f32 %v235, %v629
        %v632 = vmul.f32 %v236, %v629
        %v633 = vsel %vm237, %v631, 0.0
        %634 = vadd.xlane.f32.xlu0 %v633
        %v635 = vpop.xlane.xlu0 %634
        %v636 = vsel %vm237, %v632, 0.0
        %637 = vadd.xlane.f32.xlu0 %v636
        %v638 = vpop.xlane.xlu0 %637
        %v639 = vmul.f32 %v631, %v631
        %v640 = vmul.f32 %v632, %v632
        %v641 = vsel %vm237, %v639, 0.0
        %642 = vadd.xlane.f32.xlu0 %v641
        %v643 = vpop.xlane.xlu0 %642
        %v644 = vsel %vm237, %v640, 0.0
        %645 = vadd.xlane.f32.xlu0 %v644
        %v646 = vpop.xlane.xlu0 %645
        %v647 = vadd.f32 %v624, %v635
        %v648 = vadd.f32 %v625, %v638
        %v649 = vadd.f32 %v626, %v643
        %v650 = vadd.f32 %v627, %v646
        %v651 = vmul.f32 %v647, 0.0125
        %v652 = vmul.f32 %v648, 0.0125
        %v653 = vmul.f32 %v649, 0.0125
        %v654 = vmul.f32 %v650, 0.0125
        %v655 = vmul.f32 %v651, %v651
        %v656 = vmul.f32 %v652, %v652
        %v657 = vsub.f32 %v653, %v655
        %v658 = vsub.f32 %v654, %v656
        %v659 = vmax.f32 %v657, 0.0
        %v660 = vmax.f32 %v658, 0.0
        %v661 = vadd.f32 %v659, 1e-05
        %v662 = vadd.f32 %v660, 1e-05
        %v663 = vrsqrt.pop %v661
        %v664 = vrsqrt.pop %v662
        %v665 = vmul.f32 %v542, %v663
        %v666 = vmul.f32 %v543, %v664
        %v667 = vld [vmem:[%s3] sm:$0xff]
        %v668 = vld [vmem:[%s3 + $0x8] sm:$0xff]
        %v669 = vmul.f32 %v562, %v663
        %v670 = vmul.f32 %v563, %v664
        %s671 = scalar_lea.vmem %s3, 16
        %v672 = vld [vmem:[%s671] sm:$0xff]
        %v673 = vld [vmem:[%s671 + $0x8] sm:$0xff]
        %v675 = vsel %vm237, %v669, 0
        %v678 = vsel %vm237, %v670, 0
        %680 = vmatprep.subr.mxu0 0.0
        %681 = vmatpush1.msra.mxu0 0.0
        %682 = vmatprep.subr.mxu0 0.0
        %683 = vmatpush1.msra.mxu0 0.0
        %684 = vmatprep.subr.mxu0 0.0
        %685 = vmatpush1.msra.mxu0 0.0
        %686 = vmatprep.subr.mxu0 0.0
        %687 = vmatpush1.msra.mxu0 0.0
        %688 = vmatprep.subr.mxu0 0.0
        %689 = vmatpush1.msra.mxu0 0.0
        %690 = vmatprep.subr.mxu0 0.0
        %691 = vmatpush1.msra.mxu0 0.0
        %692 = vmatprep.subr.mxu0 0.0
        %693 = vmatpush1.msra.mxu0 0.0
        %694 = vmatprep.subr.mxu0 0.0
        %695 = vmatpush1.msra.mxu0 0.0
        %696 = vmatprep.subr.mxu0 0.0
        %697 = vmatpush1.msra.mxu0 0.0
        %698 = vmatprep.subr.mxu0 0.0
        %699 = vmatpush1.msra.mxu0 0.0
        %700 = vmatprep.subr.mxu0 0.0
        %701 = vmatpush1.msra.mxu0 0.0
        %702 = vmatprep.subr.mxu0 0.0
        %703 = vmatpush1.msra.mxu0 0.0
        %704 = vmatprep.subr.mxu0 0.0
        %705 = vmatpush1.msra.mxu0 0.0
        %706 = vmatprep.subr.mxu0 0.0
        %707 = vmatpush1.msra.mxu0 0.0
        %708 = vmatprep.subr.mxu0 0.0
        %709 = vmatpush1.msra.mxu0 %v673
        %710 = vmatprep.subr.mxu0 0.0
        %711 = vmatpush1.msra.mxu0 %v672
        %712 = vmatprep.subr.mxu0 0.0
        %713 = vmatpush2.msra.mxu0 0.0
        %714 = vmatprep.subr.mxu0 0.0
        %715 = vmatpush2.msra.mxu0 0.0
        %716 = vmatprep.subr.mxu0 0.0
        %717 = vmatpush2.msra.mxu0 0.0
        %718 = vmatprep.subr.mxu0 0.0
        %719 = vmatpush2.msra.mxu0 0.0
        %720 = vmatprep.subr.mxu0 0.0
        %721 = vmatpush2.msra.mxu0 0.0
        %722 = vmatprep.subr.mxu0 0.0
        %723 = vmatpush2.msra.mxu0 0.0
        %724 = vmatprep.subr.mxu0 0.0
        %725 = vmatpush2.msra.mxu0 0.0
        %726 = vmatprep.subr.mxu0 0.0
        %727 = vmatpush2.msra.mxu0 0.0
        %728 = vmatprep.subr.mxu0 0.0
        %729 = vmatpush2.msra.mxu0 0.0
        %730 = vmatprep.subr.mxu0 0.0
        %731 = vmatpush2.msra.mxu0 0.0
        %732 = vmatprep.subr.mxu0 0.0
        %733 = vmatpush2.msra.mxu0 0.0
        %734 = vmatprep.subr.mxu0 0.0
        %735 = vmatpush2.msra.mxu0 0.0
        %736 = vmatprep.subr.mxu0 0.0
        %737 = vmatpush2.msra.mxu0 0.0
        %738 = vmatprep.subr.mxu0 0.0
        %739 = vmatpush2.msra.mxu0 0.0
        %740 = vmatprep.subr.mxu0 0.0
        %741 = vmatpush2.msra.mxu0 0.0
        %742 = vmatprep.subr.mxu0 0.0
        %743 = vmatpush2.msra.mxu0 0.0
        %744 = vmatprep.mubr.f32.mxu0 0.0
        %745 = vmatmul.mubr.f32.gmra.mxu0 %v675
        %v746 = vpop.f32.mrf.mxu0
        %v747 = vadd.f32 0.0, %v746
        %v748 = vpop.f32.mrf.mxu0
        %749 = vmatprep.mubr.f32.mxu0 0.0
        %750 = vmatmul.mubr.f32.gmra.mxu0 %v678
        %v751 = vpop.f32.mrf.mxu0
        %v752 = vadd.f32 0.0, %v751
        %v753 = vpop.f32.mrf.mxu0
        %754 = vdwg.mxu0
        %v756 = vsel %vm237, %v665, 0
        %v759 = vsel %vm237, %v666, 0
        %761 = vmatprep.subr.mxu0 0.0
        %762 = vmatpush1.msra.mxu0 0.0
        %763 = vmatprep.subr.mxu0 0.0
        %764 = vmatpush1.msra.mxu0 0.0
        %765 = vmatprep.subr.mxu0 0.0
        %766 = vmatpush1.msra.mxu0 0.0
        %767 = vmatprep.subr.mxu0 0.0
        %768 = vmatpush1.msra.mxu0 0.0
        %769 = vmatprep.subr.mxu0 0.0
        %770 = vmatpush1.msra.mxu0 0.0
        %771 = vmatprep.subr.mxu0 0.0
        %772 = vmatpush1.msra.mxu0 0.0
        %773 = vmatprep.subr.mxu0 0.0
        %774 = vmatpush1.msra.mxu0 0.0
        %775 = vmatprep.subr.mxu0 0.0
        %776 = vmatpush1.msra.mxu0 0.0
        %777 = vmatprep.subr.mxu0 0.0
        %778 = vmatpush1.msra.mxu0 0.0
        %779 = vmatprep.subr.mxu0 0.0
        %780 = vmatpush1.msra.mxu0 0.0
        %781 = vmatprep.subr.mxu0 0.0
        %782 = vmatpush1.msra.mxu0 0.0
        %783 = vmatprep.subr.mxu0 0.0
        %784 = vmatpush1.msra.mxu0 0.0
        %785 = vmatprep.subr.mxu0 0.0
        %786 = vmatpush1.msra.mxu0 0.0
        %787 = vmatprep.subr.mxu0 0.0
        %788 = vmatpush1.msra.mxu0 0.0
        %789 = vmatprep.subr.mxu0 0.0
        %790 = vmatpush1.msra.mxu0 %v668
        %791 = vmatprep.subr.mxu0 0.0
        %792 = vmatpush1.msra.mxu0 %v667
        %793 = vmatprep.subr.mxu0 0.0
        %794 = vmatpush2.msra.mxu0 0.0
        %795 = vmatprep.subr.mxu0 0.0
        %796 = vmatpush2.msra.mxu0 0.0
        %797 = vmatprep.subr.mxu0 0.0
        %798 = vmatpush2.msra.mxu0 0.0
        %799 = vmatprep.subr.mxu0 0.0
        %800 = vmatpush2.msra.mxu0 0.0
        %801 = vmatprep.subr.mxu0 0.0
        %802 = vmatpush2.msra.mxu0 0.0
        %803 = vmatprep.subr.mxu0 0.0
        %804 = vmatpush2.msra.mxu0 0.0
        %805 = vmatprep.subr.mxu0 0.0
        %806 = vmatpush2.msra.mxu0 0.0
        %807 = vmatprep.subr.mxu0 0.0
        %808 = vmatpush2.msra.mxu0 0.0
        %809 = vmatprep.subr.mxu0 0.0
        %810 = vmatpush2.msra.mxu0 0.0
        %811 = vmatprep.subr.mxu0 0.0
        %812 = vmatpush2.msra.mxu0 0.0
        %813 = vmatprep.subr.mxu0 0.0
        %814 = vmatpush2.msra.mxu0 0.0
        %815 = vmatprep.subr.mxu0 0.0
        %816 = vmatpush2.msra.mxu0 0.0
        %817 = vmatprep.subr.mxu0 0.0
        %818 = vmatpush2.msra.mxu0 0.0
        %819 = vmatprep.subr.mxu0 0.0
        %820 = vmatpush2.msra.mxu0 0.0
        %821 = vmatprep.subr.mxu0 0.0
        %822 = vmatpush2.msra.mxu0 0.0
        %823 = vmatprep.subr.mxu0 0.0
        %824 = vmatpush2.msra.mxu0 0.0
        %825 = vmatprep.mubr.f32.mxu0 0.0
        %826 = vmatmul.mubr.f32.gmra.mxu0 %v756
        %v827 = vpop.f32.mrf.mxu0
        %v828 = vadd.f32 %v747, %v827
        %v829 = vpop.f32.mrf.mxu0
        %830 = vmatprep.mubr.f32.mxu0 0.0
        %831 = vmatmul.mubr.f32.gmra.mxu0 %v759
        %v832 = vpop.f32.mrf.mxu0
        %v833 = vadd.f32 %v752, %v832
        %v834 = vpop.f32.mrf.mxu0
        %835 = vdwg.mxu0
        %v836 = vmul.f32 %v585, %v663
        %v837 = vmul.f32 %v586, %v664
        %s838 = scalar_lea.vmem %s3, 32
        %v839 = vld [vmem:[%s838] sm:$0xff]
        %v840 = vld [vmem:[%s838 + $0x8] sm:$0xff]
        %v842 = vsel %vm237, %v836, 0
        %v845 = vsel %vm237, %v837, 0
        %847 = vmatprep.subr.mxu0 0.0
        %848 = vmatpush1.msra.mxu0 0.0
        %849 = vmatprep.subr.mxu0 0.0
        %850 = vmatpush1.msra.mxu0 0.0
        %851 = vmatprep.subr.mxu0 0.0
        %852 = vmatpush1.msra.mxu0 0.0
        %853 = vmatprep.subr.mxu0 0.0
        %854 = vmatpush1.msra.mxu0 0.0
        %855 = vmatprep.subr.mxu0 0.0
        %856 = vmatpush1.msra.mxu0 0.0
        %857 = vmatprep.subr.mxu0 0.0
        %858 = vmatpush1.msra.mxu0 0.0
        %859 = vmatprep.subr.mxu0 0.0
        %860 = vmatpush1.msra.mxu0 0.0
        %861 = vmatprep.subr.mxu0 0.0
        %862 = vmatpush1.msra.mxu0 0.0
        %863 = vmatprep.subr.mxu0 0.0
        %864 = vmatpush1.msra.mxu0 0.0
        %865 = vmatprep.subr.mxu0 0.0
        %866 = vmatpush1.msra.mxu0 0.0
        %867 = vmatprep.subr.mxu0 0.0
        %868 = vmatpush1.msra.mxu0 0.0
        %869 = vmatprep.subr.mxu0 0.0
        %870 = vmatpush1.msra.mxu0 0.0
        %871 = vmatprep.subr.mxu0 0.0
        %872 = vmatpush1.msra.mxu0 0.0
        %873 = vmatprep.subr.mxu0 0.0
        %874 = vmatpush1.msra.mxu0 0.0
        %875 = vmatprep.subr.mxu0 0.0
        %876 = vmatpush1.msra.mxu0 %v840
        %877 = vmatprep.subr.mxu0 0.0
        %878 = vmatpush1.msra.mxu0 %v839
        %879 = vmatprep.subr.mxu0 0.0
        %880 = vmatpush2.msra.mxu0 0.0
        %881 = vmatprep.subr.mxu0 0.0
        %882 = vmatpush2.msra.mxu0 0.0
        %883 = vmatprep.subr.mxu0 0.0
        %884 = vmatpush2.msra.mxu0 0.0
        %885 = vmatprep.subr.mxu0 0.0
        %886 = vmatpush2.msra.mxu0 0.0
        %887 = vmatprep.subr.mxu0 0.0
        %888 = vmatpush2.msra.mxu0 0.0
        %889 = vmatprep.subr.mxu0 0.0
        %890 = vmatpush2.msra.mxu0 0.0
        %891 = vmatprep.subr.mxu0 0.0
        %892 = vmatpush2.msra.mxu0 0.0
        %893 = vmatprep.subr.mxu0 0.0
        %894 = vmatpush2.msra.mxu0 0.0
        %895 = vmatprep.subr.mxu0 0.0
        %896 = vmatpush2.msra.mxu0 0.0
        %897 = vmatprep.subr.mxu0 0.0
        %898 = vmatpush2.msra.mxu0 0.0
        %899 = vmatprep.subr.mxu0 0.0
        %900 = vmatpush2.msra.mxu0 0.0
        %901 = vmatprep.subr.mxu0 0.0
        %902 = vmatpush2.msra.mxu0 0.0
        %903 = vmatprep.subr.mxu0 0.0
        %904 = vmatpush2.msra.mxu0 0.0
        %905 = vmatprep.subr.mxu0 0.0
        %906 = vmatpush2.msra.mxu0 0.0
        %907 = vmatprep.subr.mxu0 0.0
        %908 = vmatpush2.msra.mxu0 0.0
        %909 = vmatprep.subr.mxu0 0.0
        %910 = vmatpush2.msra.mxu0 0.0
        %911 = vmatprep.mubr.f32.mxu0 0.0
        %912 = vmatmul.mubr.f32.gmra.mxu0 %v842
        %v913 = vpop.f32.mrf.mxu0
        %v914 = vadd.f32 0.0, %v913
        %v915 = vpop.f32.mrf.mxu0
        %916 = vmatprep.mubr.f32.mxu0 0.0
        %917 = vmatmul.mubr.f32.gmra.mxu0 %v845
        %v918 = vpop.f32.mrf.mxu0
        %v919 = vadd.f32 0.0, %v918
        %v920 = vpop.f32.mrf.mxu0
        %921 = vdwg.mxu0
        %v922 = vadd.f32 %v828, %v914
        %v923 = vadd.f32 %v833, %v919
        %v924 = vmul.f32 %v608, %v663
        %v925 = vmul.f32 %v609, %v664
        %s926 = scalar_lea.vmem %s3, 48
        %v927 = vld [vmem:[%s926] sm:$0xff]
        %v928 = vld [vmem:[%s926 + $0x8] sm:$0xff]
        %v930 = vsel %vm237, %v924, 0
        %v933 = vsel %vm237, %v925, 0
        %935 = vmatprep.subr.mxu0 0.0
        %936 = vmatpush1.msra.mxu0 0.0
        %937 = vmatprep.subr.mxu0 0.0
        %938 = vmatpush1.msra.mxu0 0.0
        %939 = vmatprep.subr.mxu0 0.0
        %940 = vmatpush1.msra.mxu0 0.0
        %941 = vmatprep.subr.mxu0 0.0
        %942 = vmatpush1.msra.mxu0 0.0
        %943 = vmatprep.subr.mxu0 0.0
        %944 = vmatpush1.msra.mxu0 0.0
        %945 = vmatprep.subr.mxu0 0.0
        %946 = vmatpush1.msra.mxu0 0.0
        %947 = vmatprep.subr.mxu0 0.0
        %948 = vmatpush1.msra.mxu0 0.0
        %949 = vmatprep.subr.mxu0 0.0
        %950 = vmatpush1.msra.mxu0 0.0
        %951 = vmatprep.subr.mxu0 0.0
        %952 = vmatpush1.msra.mxu0 0.0
        %953 = vmatprep.subr.mxu0 0.0
        %954 = vmatpush1.msra.mxu0 0.0
        %955 = vmatprep.subr.mxu0 0.0
        %956 = vmatpush1.msra.mxu0 0.0
        %957 = vmatprep.subr.mxu0 0.0
        %958 = vmatpush1.msra.mxu0 0.0
        %959 = vmatprep.subr.mxu0 0.0
        %960 = vmatpush1.msra.mxu0 0.0
        %961 = vmatprep.subr.mxu0 0.0
        %962 = vmatpush1.msra.mxu0 0.0
        %963 = vmatprep.subr.mxu0 0.0
        %964 = vmatpush1.msra.mxu0 %v928
        %965 = vmatprep.subr.mxu0 0.0
        %966 = vmatpush1.msra.mxu0 %v927
        %967 = vmatprep.subr.mxu0 0.0
        %968 = vmatpush2.msra.mxu0 0.0
        %969 = vmatprep.subr.mxu0 0.0
        %970 = vmatpush2.msra.mxu0 0.0
        %971 = vmatprep.subr.mxu0 0.0
        %972 = vmatpush2.msra.mxu0 0.0
        %973 = vmatprep.subr.mxu0 0.0
        %974 = vmatpush2.msra.mxu0 0.0
        %975 = vmatprep.subr.mxu0 0.0
        %976 = vmatpush2.msra.mxu0 0.0
        %977 = vmatprep.subr.mxu0 0.0
        %978 = vmatpush2.msra.mxu0 0.0
        %979 = vmatprep.subr.mxu0 0.0
        %980 = vmatpush2.msra.mxu0 0.0
        %981 = vmatprep.subr.mxu0 0.0
        %982 = vmatpush2.msra.mxu0 0.0
        %983 = vmatprep.subr.mxu0 0.0
        %984 = vmatpush2.msra.mxu0 0.0
        %985 = vmatprep.subr.mxu0 0.0
        %986 = vmatpush2.msra.mxu0 0.0
        %987 = vmatprep.subr.mxu0 0.0
        %988 = vmatpush2.msra.mxu0 0.0
        %989 = vmatprep.subr.mxu0 0.0
        %990 = vmatpush2.msra.mxu0 0.0
        %991 = vmatprep.subr.mxu0 0.0
        %992 = vmatpush2.msra.mxu0 0.0
        %993 = vmatprep.subr.mxu0 0.0
        %994 = vmatpush2.msra.mxu0 0.0
        %995 = vmatprep.subr.mxu0 0.0
        %996 = vmatpush2.msra.mxu0 0.0
        %997 = vmatprep.subr.mxu0 0.0
        %998 = vmatpush2.msra.mxu0 0.0
        %999 = vmatprep.mubr.f32.mxu0 0.0
        %1000 = vmatmul.mubr.f32.gmra.mxu0 %v930
        %v1001 = vpop.f32.mrf.mxu0
        %v1002 = vadd.f32 0.0, %v1001
        %v1003 = vpop.f32.mrf.mxu0
        %1004 = vmatprep.mubr.f32.mxu0 0.0
        %1005 = vmatmul.mubr.f32.gmra.mxu0 %v933
        %v1006 = vpop.f32.mrf.mxu0
        %v1007 = vadd.f32 0.0, %v1006
        %v1008 = vpop.f32.mrf.mxu0
        %1009 = vdwg.mxu0
        %v1010 = vadd.f32 %v922, %v1002
        %v1011 = vadd.f32 %v923, %v1007
        %v1012 = vmul.f32 %v631, %v663
        %v1013 = vmul.f32 %v632, %v664
        %s1014 = scalar_lea.vmem %s3, 64
        %v1015 = vld [vmem:[%s1014] sm:$0xff]
        %v1016 = vld [vmem:[%s1014 + $0x8] sm:$0xff]
        %v1018 = vsel %vm237, %v1012, 0
        %v1021 = vsel %vm237, %v1013, 0
        %1023 = vmatprep.subr.mxu0 0.0
        %1024 = vmatpush1.msra.mxu0 0.0
        %1025 = vmatprep.subr.mxu0 0.0
        %1026 = vmatpush1.msra.mxu0 0.0
        %1027 = vmatprep.subr.mxu0 0.0
        %1028 = vmatpush1.msra.mxu0 0.0
        %1029 = vmatprep.subr.mxu0 0.0
        %1030 = vmatpush1.msra.mxu0 0.0
        %1031 = vmatprep.subr.mxu0 0.0
        %1032 = vmatpush1.msra.mxu0 0.0
        %1033 = vmatprep.subr.mxu0 0.0
        %1034 = vmatpush1.msra.mxu0 0.0
        %1035 = vmatprep.subr.mxu0 0.0
        %1036 = vmatpush1.msra.mxu0 0.0
        %1037 = vmatprep.subr.mxu0 0.0
        %1038 = vmatpush1.msra.mxu0 0.0
        %1039 = vmatprep.subr.mxu0 0.0
        %1040 = vmatpush1.msra.mxu0 0.0
        %1041 = vmatprep.subr.mxu0 0.0
        %1042 = vmatpush1.msra.mxu0 0.0
        %1043 = vmatprep.subr.mxu0 0.0
        %1044 = vmatpush1.msra.mxu0 0.0
        %1045 = vmatprep.subr.mxu0 0.0
        %1046 = vmatpush1.msra.mxu0 0.0
        %1047 = vmatprep.subr.mxu0 0.0
        %1048 = vmatpush1.msra.mxu0 0.0
        %1049 = vmatprep.subr.mxu0 0.0
        %1050 = vmatpush1.msra.mxu0 0.0
        %1051 = vmatprep.subr.mxu0 0.0
        %1052 = vmatpush1.msra.mxu0 %v1016
        %1053 = vmatprep.subr.mxu0 0.0
        %1054 = vmatpush1.msra.mxu0 %v1015
        %1055 = vmatprep.subr.mxu0 0.0
        %1056 = vmatpush2.msra.mxu0 0.0
        %1057 = vmatprep.subr.mxu0 0.0
        %1058 = vmatpush2.msra.mxu0 0.0
        %1059 = vmatprep.subr.mxu0 0.0
        %1060 = vmatpush2.msra.mxu0 0.0
        %1061 = vmatprep.subr.mxu0 0.0
        %1062 = vmatpush2.msra.mxu0 0.0
        %1063 = vmatprep.subr.mxu0 0.0
        %1064 = vmatpush2.msra.mxu0 0.0
        %1065 = vmatprep.subr.mxu0 0.0
        %1066 = vmatpush2.msra.mxu0 0.0
        %1067 = vmatprep.subr.mxu0 0.0
        %1068 = vmatpush2.msra.mxu0 0.0
        %1069 = vmatprep.subr.mxu0 0.0
        %1070 = vmatpush2.msra.mxu0 0.0
        %1071 = vmatprep.subr.mxu0 0.0
        %1072 = vmatpush2.msra.mxu0 0.0
        %1073 = vmatprep.subr.mxu0 0.0
        %1074 = vmatpush2.msra.mxu0 0.0
        %1075 = vmatprep.subr.mxu0 0.0
        %1076 = vmatpush2.msra.mxu0 0.0
        %1077 = vmatprep.subr.mxu0 0.0
        %1078 = vmatpush2.msra.mxu0 0.0
        %1079 = vmatprep.subr.mxu0 0.0
        %1080 = vmatpush2.msra.mxu0 0.0
        %1081 = vmatprep.subr.mxu0 0.0
        %1082 = vmatpush2.msra.mxu0 0.0
        %1083 = vmatprep.subr.mxu0 0.0
        %1084 = vmatpush2.msra.mxu0 0.0
        %1085 = vmatprep.subr.mxu0 0.0
        %1086 = vmatpush2.msra.mxu0 0.0
        %1087 = vmatprep.mubr.f32.mxu0 0.0
        %1088 = vmatmul.mubr.f32.gmra.mxu0 %v1018
        %v1089 = vpop.f32.mrf.mxu0
        %v1090 = vadd.f32 0.0, %v1089
        %v1091 = vpop.f32.mrf.mxu0
        %1092 = vmatprep.mubr.f32.mxu0 0.0
        %1093 = vmatmul.mubr.f32.gmra.mxu0 %v1021
        %v1094 = vpop.f32.mrf.mxu0
        %v1095 = vadd.f32 0.0, %v1094
        %v1096 = vpop.f32.mrf.mxu0
        %1097 = vdwg.mxu0
        %v1098 = vadd.f32 %v1010, %v1090
        %v1099 = vadd.f32 %v1011, %v1095
        %v1100 = vld [vmem:[%s4] sm:$0x3]
        %v1101 = vmul.f32 %v651, %v663
        %v1102 = vmul.f32 %v652, %v664
        %v1103 = vlaneseq
        %v1104 = vshrl.u32 %v1103, 7
        %v1105 = vsub.s32 1, %v1104
        %v1106 = vrot.slane %v1100, %v1105
        %v1107 = vmul.f32 %v1101, %v1106
        %v1108 = vmul.f32 %v1102, %v1106
        %v1109 = vlaneseq
        %v1110 = vshrl.u32 %v1109, 7
        %v1111 = vsub.s32 0, %v1110
        %v1112 = vrot.slane %v1100, %v1111
        %v1113 = vsub.f32 %v1112, %v1107
        %v1114 = vsub.f32 %v1112, %v1108
        %v1115 = vadd.f32 %v1098, %v1113
        %v1116 = vadd.f32 %v1099, %v1114
        %1117 = vst [vmem:[%s217] sm:$0xff] %v1115
        %1118 = vst [vmem:[%s217 + $0x8] sm:$0xff] %v1116
        %s1119 = sand.u32 %s137, 1
        %s1120 = scalar_lea.sflag [#allocation3], %s1119
        %s1121 = sand.u32 %s137, 1
        %s1122 = smul.addr %s1121, 16
        %s1123 = scalar_lea.vmem [#allocation2], %s1122
        // Predicated region
        $region41: #{patch_merging_forward.1} parent=39 // pred_check
          %p1124 = pneg %p147
        $region42: #{patch_merging_forward.1} parent=39 // pred_check_branch
          %1126 = sbr.rel (%p1124) target = $region44
        $region43: #{patch_merging_forward.1} parent=39 // pred_region
          %s1128 = ssub.s32 256, 256
          %1129 = vsyncadd %s1120, %s1128
          %s1130 = smul.addr %s19, 2
          %s1131 = smul.addr %s1130, 128
          %s1132 = scalar_lea.hbm %s5, %s1131
          %s1133 = sshll.u32 %s1123, 4
          %s1134 = int_to_ptr.vmem [resolvable:$true] %s1133
          %1139 = dma.vmem_to_hbm [thread:$0]  %s1134, 256, %s1132, %s1120, 128, 128, 8
        $region44: #{patch_merging_forward.1} parent=39 // pred_fallthru
          _
      $region40: #{patch_merging_forward.1} parent=5 // pred_fallthru
        _
      %p1140 = scmp.le.s32.totalorder 2, %s14
      // Predicated region
      $region45: #{patch_merging_forward.1} parent=5 // pred_check
        %p1141 = pneg %p1140
      $region46: #{patch_merging_forward.1} parent=5 // pred_check_branch
        %1143 = sbr.rel (%p1141) target = $region48
      $region47: #{patch_merging_forward.1} parent=5 // pred_region
        %s1144 = ssub.s32 %s14, 2
        // Predicated region
        $region49: #{patch_merging_forward.1} parent=47 // pred_check
          %p1145 = pneg %p153
        $region50: #{patch_merging_forward.1} parent=47 // pred_check_branch
          %1147 = sbr.rel (%p1145) target = $region52
        $region51: #{patch_merging_forward.1} parent=47 // pred_region
          %s1148 = sand.u32 %s138, 1
          %s1149 = scalar_lea.sflag [#allocation3], %s1148
          %s1150 = sand.u32 %s138, 1
          %s1151 = smul.addr %s1150, 16
          %s1152 = scalar_lea.vmem [#allocation2], %s1151
          %1153 = dma.done %s1149, 256
        $region52: #{patch_merging_forward.1} parent=47 // pred_fallthru
          _
      $region48: #{patch_merging_forward.1} parent=5 // pred_fallthru
        _
    $region6: #{patch_merging_forward.1} parent=1 // loop_footer
      %s18 = sadd.s32 1, %s14
    $region7: #{patch_merging_forward.1} parent=1 // loop_footer_branch
      %13 = sbr.rel target = $region3
    $region8: #{patch_merging_forward.1} parent=1 // loop_exit
      _
    %1154 = vsyncpa [#allocation3], 1
    %s1155 = scalar_lea.sflag [#allocation3], 1
    %1156 = vsyncpa %s1155, 1

</llo_original>
